<compile_context>
chip_gen: v6e
topology: v6e:2x2x1
jax: 0.10.0
libtpu: 0.0.40
codegen_flags: <defaults>
</compile_context>

<pallas_src>
import functools

import jax
import jax.numpy as jnp
from jax.experimental import pallas as pl
from jax.experimental.pallas import tpu as pltpu

NUM_LAYERS = 2          # stands in for config['num layers']
VOCAB = 16
HIDDEN = 32
BATCH = 4
SEQ = 8


# ----------------------------------------------------------------------------
# Pallas kernel: one bidirectional GRU layer (both directions fused along the
# lane axis), full sequence, length masked ("packed" semantics).
#
# Lane layouts:
#   h / out : (B, 2H)  -> [:, :H] = forward, [:, H:] = backward
#   gi / gh : (B, 6H)  -> [r_f, r_b, z_f, z_b, n_f, n_b]
# ----------------------------------------------------------------------------
def _bigru_layer_kernel(lens_ref, gi_ref, h0_ref, whh_ref, bhh_ref,
                        out_ref, hn_ref, *, seq_len, hidden, batch):
    H, B = hidden, batch

    # ---- loop-invariant vectors (hoisted out of the recurrence) -------------
    lens = jnp.broadcast_to(lens_ref[...], (B, 2 * H))              # int32
    lane2 = jax.lax.broadcasted_iota(jnp.int32, (B, 2 * H), 1)
    is_fwd_h = lane2 < H                                            # fwd lanes of h/out
    lane6 = jax.lax.broadcasted_iota(jnp.int32, (B, 6 * H), 1)
    is_fwd_gate = ((lane6 < H)
                   | ((lane6 >= 2 * H) & (lane6 < 3 * H))
                   | ((lane6 >= 4 * H) & (lane6 < 5 * H)))          # fwd lanes of gi/gh
    whh = whh_ref[...]                                              # (2H, 6H) block-diag
    bhh = bhh_ref[...]                                              # (1, 6H)

    def step(t, h):
        # fwd direction consumes real time t, bwd consumes real time T-1-t;
        # gi stays in natural time order, no host-side reverse needed.
        gi_t = gi_ref[t]
        gi_rt = gi_ref[seq_len - 1 - t]
        gi = jnp.where(is_fwd_gate, gi_t, gi_rt)                    # (B, 6H)

        # Single recurrent projection for BOTH directions (block-diagonal W_hh)
        # -> no per-step sublane concatenate, MXU->vreg path stays clean.
        gh = jnp.dot(h, whh, preferred_element_type=jnp.float32) + bhh

        r = jax.nn.sigmoid(gi[:, :2 * H] + gh[:, :2 * H])
        z = jax.nn.sigmoid(gi[:, 2 * H:4 * H] + gh[:, 2 * H:4 * H])
        n = jnp.tanh(gi[:, 4 * H:] + r * gh[:, 4 * H:])
        h_new = (1.0 - z) * n + z * h

        # Packed-sequence masking computed in-kernel: padded steps do not
        # update the hidden state and produce zero output.
        real_t = jnp.where(is_fwd_h, t, seq_len - 1 - t)
        valid = real_t < lens
        h_upd = jnp.where(valid, h_new, h)

        # One lane-dense (B, 2H) store per step, in scan order.  The bwd
        # lane-half is time-reversed once in the wrapper.
        out_ref[t] = jnp.where(valid, h_upd, 0.0)
        return h_upd

    h_final = jax.lax.fori_loop(0, seq_len, step, h0_ref[...], unroll=True)
    hn_ref[...] = h_final


def bigru_layer(x_tbh, h0_fwd, h0_bwd, p_fwd, p_bwd, lengths):
    """One bidirectional GRU layer over the whole (cropped) sequence."""
    T, B, Hin = x_tbh.shape
    H = h0_fwd.shape[-1]

    def interleave(af, ab):
        # (..., 3H) per direction ([r|z|n]) -> (..., 6H) [r_f,r_b,z_f,z_b,n_f,n_b]
        parts = []
        for g in range(3):
            parts.append(af[..., g * H:(g + 1) * H])
            parts.append(ab[..., g * H:(g + 1) * H])
        return jnp.concatenate(parts, axis=-1)

    # ---- once-per-layer weight prep (tiny) ----------------------------------
    w_ih = interleave(p_fwd["w_ih_t"], p_bwd["w_ih_t"])             # (Hin, 6H)
    b_ih = interleave(p_fwd["b_ih"], p_bwd["b_ih"])                 # (1, 6H)
    b_hh = interleave(p_fwd["b_hh"], p_bwd["b_hh"])                 # (1, 6H)
    zeros_h = jnp.zeros_like(p_fwd["w_hh_t"])
    w_hh = jnp.concatenate(
        [interleave(p_fwd["w_hh_t"], zeros_h),      # rows 0:H   act on h_fwd
         interleave(zeros_h, p_bwd["w_hh_t"])],     # rows H:2H  act on h_bwd
        axis=0)                                     # (2H, 6H) block-diagonal

    # ---- hoisted input projection: one matmul, all timesteps, both dirs -----
    gi = (jnp.dot(x_tbh.reshape(T * B, Hin), w_ih) + b_ih).reshape(T, B, 6 * H)

    h0 = jnp.concatenate([h0_fwd, h0_bwd], axis=-1)                 # (B, 2H)
    lens2d = lengths.reshape(B, 1).astype(jnp.int32)

    kernel = functools.partial(_bigru_layer_kernel, seq_len=T, hidden=H, batch=B)

    out, h_n = pl.pallas_call(
        kernel,
        out_shape=(jax.ShapeDtypeStruct((T, B, 2 * H), jnp.float32),
                   jax.ShapeDtypeStruct((B, 2 * H), jnp.float32)),
        grid=(1,),
        in_specs=[
            pl.BlockSpec((B, 1), lambda i: (0, 0)),                 # lengths
            pl.BlockSpec((T, B, 6 * H), lambda i: (0, 0, 0)),       # gi (resident)
            pl.BlockSpec((B, 2 * H), lambda i: (0, 0)),             # h0 (lane-stacked)
            pl.BlockSpec((2 * H, 6 * H), lambda i: (0, 0)),         # W_hh block-diag
            pl.BlockSpec((1, 6 * H), lambda i: (0, 0)),             # b_hh interleaved
        ],
        out_specs=(pl.BlockSpec((T, B, 2 * H), lambda i: (0, 0, 0)),
                   pl.BlockSpec((B, 2 * H), lambda i: (0, 0))),
        compiler_params=pltpu.CompilerParams(
            dimension_semantics=("arbitrary",)),
    )(lens2d, gi, h0, w_hh, b_hh)

    # Split & un-reverse the bwd half (scan order -> time order); the result is
    # already a lane-adjacent (T, B, 2H) slab for the next layer's W_ih matmul.
    layer_out = jnp.concatenate([out[:, :, :H], out[::-1, :, H:]], axis=-1)
    return layer_out, h_n[:, :H], h_n[:, H:]


# ----------------------------------------------------------------------------
# Parameter construction (deterministic, PyTorch-style uniform init).
# ----------------------------------------------------------------------------
def init_params(key, vocab, hidden, num_layers):
    k = 1.0 / jnp.sqrt(jnp.float32(hidden))
    keys = jax.random.split(key, 1 + num_layers * 2 * 4)
    ki = iter(keys)

    emb = jax.random.normal(next(ki), (vocab, hidden), jnp.float32)
    emb = emb.at[0].set(0.0)                       # padding_idx=0

    gru = []
    for layer in range(num_layers):
        h_in = hidden if layer == 0 else 2 * hidden
        dirs = []
        for _ in range(2):                         # forward, backward
            w_ih = jax.random.uniform(next(ki), (3 * hidden, h_in), jnp.float32, -k, k)
            w_hh = jax.random.uniform(next(ki), (3 * hidden, hidden), jnp.float32, -k, k)
            b_ih = jax.random.uniform(next(ki), (3 * hidden,), jnp.float32, -k, k)
            b_hh = jax.random.uniform(next(ki), (3 * hidden,), jnp.float32, -k, k)
            dirs.append(dict(w_ih_t=w_ih.T, w_hh_t=w_hh.T,
                             b_ih=b_ih.reshape(1, -1), b_hh=b_hh.reshape(1, -1)))
        gru.append(dirs)
    return dict(embedding=emb, gru=gru)


# ----------------------------------------------------------------------------
# Forward pass (mirrors EncoderRNN.forward).
# ----------------------------------------------------------------------------
def encoder_forward(params, input_var, hidden, input_lengths):
    B, _ = input_var.shape
    lengths = jnp.asarray(input_lengths, jnp.int32)
    # pad_packed_sequence crops to max(input_lengths).
    # TODO(synk): bucket max-length to a small static set to avoid recompiles.
    t_out = int(max(input_lengths))

    embedded = jnp.take(params["embedding"], input_var, axis=0)   # (B, T, H)
    x = jnp.transpose(embedded, (1, 0, 2))[:t_out]                # (T_out, B, H)
    # TODO(synk): nn.Dropout is constructed in __init__ but never applied in
    # forward(), so it is intentionally omitted here.

    h_finals = []
    layer_in = x
    for layer in range(NUM_LAYERS):
        p_f = params["gru"][layer][0]
        p_b = params["gru"][layer][1]
        layer_out, hn_f, hn_b = bigru_layer(
            layer_in, hidden[2 * layer], hidden[2 * layer + 1], p_f, p_b, lengths)
        h_finals.extend([hn_f, hn_b])
        layer_in = layer_out                                      # (T_out, B, 2H)

    output = jnp.transpose(layer_in, (1, 0, 2))                   # (B, T_out, 2H)
    hidden_out = jnp.stack(h_finals, axis=0)                      # (2*L, B, H)
    return output, hidden_out


# ----------------------------------------------------------------------------
# Pure-JAX reference (same math, no Pallas) for a correctness check.
# ----------------------------------------------------------------------------
def _ref_gru_direction(x, h0, p, lengths, reverse):
    T, B, H = x.shape[0], x.shape[1], h0.shape[-1]
    out = jnp.zeros((T, B, H), jnp.float32)
    h = h0
    trange = range(T - 1, -1, -1) if reverse else range(T)
    for t in trange:
        gi = x[t] @ p["w_ih_t"] + p["b_ih"]
        gh = h @ p["w_hh_t"] + p["b_hh"]
        r = jax.nn.sigmoid(gi[:, :H] + gh[:, :H])
        z = jax.nn.sigmoid(gi[:, H:2 * H] + gh[:, H:2 * H])
        n = jnp.tanh(gi[:, 2 * H:] + r * gh[:, 2 * H:])
        h_new = (1 - z) * n + z * h
        mask = (t < lengths).reshape(B, 1)
        h = jnp.where(mask, h_new, h)
        out = out.at[t].set(jnp.where(mask, h, 0.0))
    return out, h


def _ref_forward(params, input_var, hidden, input_lengths):
    B, T = input_var.shape
    lengths = jnp.asarray(input_lengths, jnp.int32)
    x = jnp.transpose(jnp.take(params["embedding"], input_var, axis=0), (1, 0, 2))
    h_finals, layer_in = [], x
    for layer in range(NUM_LAYERS):
        outs = []
        for d, rev in enumerate((False, True)):
            o, h_n = _ref_gru_direction(layer_in, hidden[2 * layer + d],
                                        params["gru"][layer][d], lengths, rev)
            outs.append(o)
            h_finals.append(h_n)
        layer_in = jnp.concatenate(outs, axis=-1)
    t_out = int(max(input_lengths))
    return (jnp.transpose(layer_in, (1, 0, 2))[:, :t_out],
            jnp.stack(h_finals, axis=0))


if __name__ == "__main__":
    key = jax.random.PRNGKey(0)
    pkey, dkey = jax.random.split(key)

    params = init_params(pkey, VOCAB, HIDDEN, NUM_LAYERS)

    # Deterministic toy batch: sorted-descending lengths, 0 is the pad token.
    input_lengths = [SEQ, 7, 5, 3]
    tokens = jax.random.randint(dkey, (BATCH, SEQ), 1, VOCAB, dtype=jnp.int32)
    pos = jnp.arange(SEQ)[None, :]
    len_arr = jnp.asarray(input_lengths, jnp.int32)[:, None]
    input_var = jnp.where(pos < len_arr, tokens, 0)               # (B, T) int32

    hidden0 = jnp.zeros((2 * NUM_LAYERS, BATCH, HIDDEN), jnp.float32)  # initHidden

    output, hidden = encoder_forward(params, input_var, hidden0, input_lengths)
    output = jax.block_until_ready(output)
    hidden = jax.block_until_ready(hidden)

    ref_out, ref_hid = _ref_forward(params, input_var, hidden0, input_lengths)

    assert output.shape == (BATCH, max(input_lengths), 2 * HIDDEN)
    assert hidden.shape == (2 * NUM_LAYERS, BATCH, HIDDEN)
    assert jnp.allclose(output, ref_out, atol=5e-5, rtol=1e-5)
    assert jnp.allclose(hidden, ref_hid, atol=5e-5, rtol=1e-5)

    print("KERNEL_OK")
</pallas_src>

<mosaic_0001>
module attributes {stable_mosaic.version = 11 : i64} {
  func.func @_bigru_layer_kernel(%arg0: i32, %arg1: memref<4x1xi32, #tpu.memory_space<vmem>>, %arg2: memref<8x4x192xf32, #tpu.memory_space<vmem>>, %arg3: memref<4x64xf32, #tpu.memory_space<vmem>>, %arg4: memref<64x192xf32, #tpu.memory_space<vmem>>, %arg5: memref<1x192xf32, #tpu.memory_space<vmem>>, %arg6: memref<8x4x64xf32, #tpu.memory_space<vmem>>, %arg7: memref<4x64xf32, #tpu.memory_space<vmem>>) attributes {dimension_semantics = [#tpu.dimension_semantics<arbitrary>], iteration_bounds = array<i64: 1>, scalar_prefetch = 0 : i64, scratch_operands = 0 : i64, tpu.core_type = #tpu.core_type<tc>, window_params = [{pipeline_mode = #tpu.pipeline_mode<synchronous>, transform_indices = @transform_0, window_bounds = array<i64: 4, 1>}, {pipeline_mode = #tpu.pipeline_mode<synchronous>, transform_indices = @transform_1, window_bounds = array<i64: 8, 4, 192>}, {pipeline_mode = #tpu.pipeline_mode<synchronous>, transform_indices = @transform_2, window_bounds = array<i64: 4, 64>}, {pipeline_mode = #tpu.pipeline_mode<synchronous>, transform_indices = @transform_3, window_bounds = array<i64: 64, 192>}, {pipeline_mode = #tpu.pipeline_mode<synchronous>, transform_indices = @transform_4, window_bounds = array<i64: 1, 192>}, {pipeline_mode = #tpu.pipeline_mode<synchronous>, transform_indices = @transform_5, window_bounds = array<i64: 8, 4, 64>}, {pipeline_mode = #tpu.pipeline_mode<synchronous>, transform_indices = @transform_6, window_bounds = array<i64: 4, 64>}]} {
    %c0 = arith.constant 0 : index
    %c0_0 = arith.constant 0 : index
    %0 = vector.load %arg1[%c0, %c0_0] : memref<4x1xi32, #tpu.memory_space<vmem>>, vector<4x1xi32>
    %1 = vector.shape_cast %0 : vector<4x1xi32> to vector<4x1xi32>
    %2 = vector.broadcast %1 : vector<4x1xi32> to vector<4x64xi32>
    %3 = tpu.iota {dimensions = array<i32: 1>} : vector<4x64xi32>
    %c32_i32 = arith.constant 32 : i32
    %4 = vector.broadcast %c32_i32 : i32 to vector<4x64xi32>
    %5 = arith.cmpi slt, %3, %4 : vector<4x64xi32>
    %6 = tpu.iota {dimensions = array<i32: 1>} : vector<4x192xi32>
    %c32_i32_1 = arith.constant 32 : i32
    %7 = vector.broadcast %c32_i32_1 : i32 to vector<4x192xi32>
    %8 = arith.cmpi slt, %6, %7 : vector<4x192xi32>
    %c64_i32 = arith.constant 64 : i32
    %9 = vector.broadcast %c64_i32 : i32 to vector<4x192xi32>
    %10 = arith.cmpi sge, %6, %9 : vector<4x192xi32>
    %c96_i32 = arith.constant 96 : i32
    %11 = vector.broadcast %c96_i32 : i32 to vector<4x192xi32>
    %12 = arith.cmpi slt, %6, %11 : vector<4x192xi32>
    %13 = arith.andi %10, %12 : vector<4x192xi1>
    %14 = arith.ori %8, %13 : vector<4x192xi1>
    %c128_i32 = arith.constant 128 : i32
    %15 = vector.broadcast %c128_i32 : i32 to vector<4x192xi32>
    %16 = arith.cmpi sge, %6, %15 : vector<4x192xi32>
    %c160_i32 = arith.constant 160 : i32
    %17 = vector.broadcast %c160_i32 : i32 to vector<4x192xi32>
    %18 = arith.cmpi slt, %6, %17 : vector<4x192xi32>
    %19 = arith.andi %16, %18 : vector<4x192xi1>
    %20 = arith.ori %14, %19 : vector<4x192xi1>
    %c0_2 = arith.constant 0 : index
    %c0_3 = arith.constant 0 : index
    %21 = vector.load %arg4[%c0_2, %c0_3] : memref<64x192xf32, #tpu.memory_space<vmem>>, vector<64x192xf32>
    %c0_4 = arith.constant 0 : index
    %c0_5 = arith.constant 0 : index
    %22 = vector.load %arg5[%c0_4, %c0_5] : memref<1x192xf32, #tpu.memory_space<vmem>>, vector<1x192xf32>
    %c0_6 = arith.constant 0 : index
    %c0_7 = arith.constant 0 : index
    %23 = vector.load %arg3[%c0_6, %c0_7] : memref<4x64xf32, #tpu.memory_space<vmem>>, vector<4x64xf32>
    %c0_i32 = arith.constant 0 : i32
    %24 = arith.index_cast %c0_i32 : i32 to index
    %c0_8 = arith.constant 0 : index
    %c0_9 = arith.constant 0 : index
    %25 = vector.load %arg2[%24, %c0_8, %c0_9] : memref<8x4x192xf32, #tpu.memory_space<vmem>>, vector<1x4x192xf32>
    %26 = vector.shape_cast %25 : vector<1x4x192xf32> to vector<4x192xf32>
    %c7_i32 = arith.constant 7 : i32
    %27 = arith.subi %c7_i32, %c0_i32 : i32
    %28 = arith.index_cast %27 : i32 to index
    %c0_10 = arith.constant 0 : index
    %c0_11 = arith.constant 0 : index
    %29 = vector.load %arg2[%28, %c0_10, %c0_11] : memref<8x4x192xf32, #tpu.memory_space<vmem>>, vector<1x4x192xf32>
    %30 = vector.shape_cast %29 : vector<1x4x192xf32> to vector<4x192xf32>
    %31 = arith.select %20, %26, %30 : vector<4x192xi1>, vector<4x192xf32>
    %cst = arith.constant dense<0.000000e+00> : vector<4x192xf32>
    %32 = tpu.matmul %23, %21, %cst {dimension_numbers = #tpu.dot_dimension_numbers<[1], [0], [0], [1], [0, 0, 1, 1], [], []>} : vector<4x64xf32>, vector<64x192xf32>, vector<4x192xf32> -> vector<4x192xf32>
    %33 = vector.broadcast %22 : vector<1x192xf32> to vector<4x192xf32>
    %34 = arith.addf %32, %33 : vector<4x192xf32>
    %35 = vector.extract_strided_slice %31 {offsets = [0, 0], sizes = [4, 64], strides = [1, 1]} : vector<4x192xf32> to vector<4x64xf32>
    %36 = vector.extract_strided_slice %34 {offsets = [0, 0], sizes = [4, 64], strides = [1, 1]} : vector<4x192xf32> to vector<4x64xf32>
    %37 = arith.addf %35, %36 : vector<4x64xf32>
    %38 = arith.negf %37 : vector<4x64xf32>
    %39 = math.exp %38 : vector<4x64xf32>
    %cst_12 = arith.constant 1.000000e+00 : f32
    %40 = vector.broadcast %cst_12 : f32 to vector<4x64xf32>
    %41 = arith.addf %40, %39 : vector<4x64xf32>
    %42 = arith.divf %40, %41 : vector<4x64xf32>
    %43 = vector.extract_strided_slice %31 {offsets = [0, 64], sizes = [4, 64], strides = [1, 1]} : vector<4x192xf32> to vector<4x64xf32>
    %44 = vector.extract_strided_slice %34 {offsets = [0, 64], sizes = [4, 64], strides = [1, 1]} : vector<4x192xf32> to vector<4x64xf32>
    %45 = arith.addf %43, %44 : vector<4x64xf32>
    %46 = arith.negf %45 : vector<4x64xf32>
    %47 = math.exp %46 : vector<4x64xf32>
    %cst_13 = arith.constant 1.000000e+00 : f32
    %48 = vector.broadcast %cst_13 : f32 to vector<4x64xf32>
    %49 = arith.addf %48, %47 : vector<4x64xf32>
    %50 = arith.divf %48, %49 : vector<4x64xf32>
    %51 = vector.extract_strided_slice %31 {offsets = [0, 128], sizes = [4, 64], strides = [1, 1]} : vector<4x192xf32> to vector<4x64xf32>
    %52 = vector.extract_strided_slice %34 {offsets = [0, 128], sizes = [4, 64], strides = [1, 1]} : vector<4x192xf32> to vector<4x64xf32>
    %53 = arith.mulf %42, %52 : vector<4x64xf32>
    %54 = arith.addf %51, %53 : vector<4x64xf32>
    %55 = math.tanh %54 : vector<4x64xf32>
    %cst_14 = arith.constant 1.000000e+00 : f32
    %56 = vector.broadcast %cst_14 : f32 to vector<4x64xf32>
    %57 = arith.subf %56, %50 : vector<4x64xf32>
    %58 = arith.mulf %57, %55 : vector<4x64xf32>
    %59 = arith.mulf %50, %23 : vector<4x64xf32>
    %60 = arith.addf %58, %59 : vector<4x64xf32>
    %c7_i32_15 = arith.constant 7 : i32
    %61 = arith.subi %c7_i32_15, %c0_i32 : i32
    %62 = vector.broadcast %c0_i32 : i32 to vector<4x64xi32>
    %63 = vector.broadcast %61 : i32 to vector<4x64xi32>
    %64 = arith.select %5, %62, %63 : vector<4x64xi1>, vector<4x64xi32>
    %65 = arith.cmpi slt, %64, %2 : vector<4x64xi32>
    %66 = arith.select %65, %60, %23 : vector<4x64xi1>, vector<4x64xf32>
    %cst_16 = arith.constant 0.000000e+00 : f32
    %67 = vector.broadcast %cst_16 : f32 to vector<4x64xf32>
    %68 = arith.select %65, %66, %67 : vector<4x64xi1>, vector<4x64xf32>
    %69 = arith.index_cast %c0_i32 : i32 to index
    %c0_17 = arith.constant 0 : index
    %c0_18 = arith.constant 0 : index
    %70 = vector.load %arg6[%69, %c0_17, %c0_18] : memref<8x4x64xf32, #tpu.memory_space<vmem>>, vector<1x4x64xf32>
    %71 = vector.shape_cast %70 : vector<1x4x64xf32> to vector<4x64xf32>
    %72 = vector.shape_cast %68 : vector<4x64xf32> to vector<1x4x64xf32>
    tpu.vector_store %arg6[%69, %c0_17, %c0_18], %72 {strides = array<i32>} : memref<8x4x64xf32, #tpu.memory_space<vmem>>, vector<1x4x64xf32>,
    %c1_i32 = arith.constant 1 : i32
    %73 = arith.index_cast %c1_i32 : i32 to index
    %c0_19 = arith.constant 0 : index
    %c0_20 = arith.constant 0 : index
    %74 = vector.load %arg2[%73, %c0_19, %c0_20] : memref<8x4x192xf32, #tpu.memory_space<vmem>>, vector<1x4x192xf32>
    %75 = vector.shape_cast %74 : vector<1x4x192xf32> to vector<4x192xf32>
    %c7_i32_21 = arith.constant 7 : i32
    %76 = arith.subi %c7_i32_21, %c1_i32 : i32
    %77 = arith.index_cast %76 : i32 to index
    %c0_22 = arith.constant 0 : index
    %c0_23 = arith.constant 0 : index
    %78 = vector.load %arg2[%77, %c0_22, %c0_23] : memref<8x4x192xf32, #tpu.memory_space<vmem>>, vector<1x4x192xf32>
    %79 = vector.shape_cast %78 : vector<1x4x192xf32> to vector<4x192xf32>
    %80 = arith.select %20, %75, %79 : vector<4x192xi1>, vector<4x192xf32>
    %cst_24 = arith.constant dense<0.000000e+00> : vector<4x192xf32>
    %81 = tpu.matmul %66, %21, %cst_24 {dimension_numbers = #tpu.dot_dimension_numbers<[1], [0], [0], [1], [0, 0, 1, 1], [], []>} : vector<4x64xf32>, vector<64x192xf32>, vector<4x192xf32> -> vector<4x192xf32>
    %82 = vector.broadcast %22 : vector<1x192xf32> to vector<4x192xf32>
    %83 = arith.addf %81, %82 : vector<4x192xf32>
    %84 = vector.extract_strided_slice %80 {offsets = [0, 0], sizes = [4, 64], strides = [1, 1]} : vector<4x192xf32> to vector<4x64xf32>
    %85 = vector.extract_strided_slice %83 {offsets = [0, 0], sizes = [4, 64], strides = [1, 1]} : vector<4x192xf32> to vector<4x64xf32>
    %86 = arith.addf %84, %85 : vector<4x64xf32>
    %87 = arith.negf %86 : vector<4x64xf32>
    %88 = math.exp %87 : vector<4x64xf32>
    %cst_25 = arith.constant 1.000000e+00 : f32
    %89 = vector.broadcast %cst_25 : f32 to vector<4x64xf32>
    %90 = arith.addf %89, %88 : vector<4x64xf32>
    %91 = arith.divf %89, %90 : vector<4x64xf32>
    %92 = vector.extract_strided_slice %80 {offsets = [0, 64], sizes = [4, 64], strides = [1, 1]} : vector<4x192xf32> to vector<4x64xf32>
    %93 = vector.extract_strided_slice %83 {offsets = [0, 64], sizes = [4, 64], strides = [1, 1]} : vector<4x192xf32> to vector<4x64xf32>
    %94 = arith.addf %92, %93 : vector<4x64xf32>
    %95 = arith.negf %94 : vector<4x64xf32>
    %96 = math.exp %95 : vector<4x64xf32>
    %cst_26 = arith.constant 1.000000e+00 : f32
    %97 = vector.broadcast %cst_26 : f32 to vector<4x64xf32>
    %98 = arith.addf %97, %96 : vector<4x64xf32>
    %99 = arith.divf %97, %98 : vector<4x64xf32>
    %100 = vector.extract_strided_slice %80 {offsets = [0, 128], sizes = [4, 64], strides = [1, 1]} : vector<4x192xf32> to vector<4x64xf32>
    %101 = vector.extract_strided_slice %83 {offsets = [0, 128], sizes = [4, 64], strides = [1, 1]} : vector<4x192xf32> to vector<4x64xf32>
    %102 = arith.mulf %91, %101 : vector<4x64xf32>
    %103 = arith.addf %100, %102 : vector<4x64xf32>
    %104 = math.tanh %103 : vector<4x64xf32>
    %cst_27 = arith.constant 1.000000e+00 : f32
    %105 = vector.broadcast %cst_27 : f32 to vector<4x64xf32>
    %106 = arith.subf %105, %99 : vector<4x64xf32>
    %107 = arith.mulf %106, %104 : vector<4x64xf32>
    %108 = arith.mulf %99, %66 : vector<4x64xf32>
    %109 = arith.addf %107, %108 : vector<4x64xf32>
    %c7_i32_28 = arith.constant 7 : i32
    %110 = arith.subi %c7_i32_28, %c1_i32 : i32
    %111 = vector.broadcast %c1_i32 : i32 to vector<4x64xi32>
    %112 = vector.broadcast %110 : i32 to vector<4x64xi32>
    %113 = arith.select %5, %111, %112 : vector<4x64xi1>, vector<4x64xi32>
    %114 = arith.cmpi slt, %113, %2 : vector<4x64xi32>
    %115 = arith.select %114, %109, %66 : vector<4x64xi1>, vector<4x64xf32>
    %cst_29 = arith.constant 0.000000e+00 : f32
    %116 = vector.broadcast %cst_29 : f32 to vector<4x64xf32>
    %117 = arith.select %114, %115, %116 : vector<4x64xi1>, vector<4x64xf32>
    %118 = arith.index_cast %c1_i32 : i32 to index
    %c0_30 = arith.constant 0 : index
    %c0_31 = arith.constant 0 : index
    %119 = vector.load %arg6[%118, %c0_30, %c0_31] : memref<8x4x64xf32, #tpu.memory_space<vmem>>, vector<1x4x64xf32>
    %120 = vector.shape_cast %119 : vector<1x4x64xf32> to vector<4x64xf32>
    %121 = vector.shape_cast %117 : vector<4x64xf32> to vector<1x4x64xf32>
    tpu.vector_store %arg6[%118, %c0_30, %c0_31], %121 {strides = array<i32>} : memref<8x4x64xf32, #tpu.memory_space<vmem>>, vector<1x4x64xf32>,
    %c2_i32 = arith.constant 2 : i32
    %122 = arith.index_cast %c2_i32 : i32 to index
    %c0_32 = arith.constant 0 : index
    %c0_33 = arith.constant 0 : index
    %123 = vector.load %arg2[%122, %c0_32, %c0_33] : memref<8x4x192xf32, #tpu.memory_space<vmem>>, vector<1x4x192xf32>
    %124 = vector.shape_cast %123 : vector<1x4x192xf32> to vector<4x192xf32>
    %c7_i32_34 = arith.constant 7 : i32
    %125 = arith.subi %c7_i32_34, %c2_i32 : i32
    %126 = arith.index_cast %125 : i32 to index
    %c0_35 = arith.constant 0 : index
    %c0_36 = arith.constant 0 : index
    %127 = vector.load %arg2[%126, %c0_35, %c0_36] : memref<8x4x192xf32, #tpu.memory_space<vmem>>, vector<1x4x192xf32>
    %128 = vector.shape_cast %127 : vector<1x4x192xf32> to vector<4x192xf32>
    %129 = arith.select %20, %124, %128 : vector<4x192xi1>, vector<4x192xf32>
    %cst_37 = arith.constant dense<0.000000e+00> : vector<4x192xf32>
    %130 = tpu.matmul %115, %21, %cst_37 {dimension_numbers = #tpu.dot_dimension_numbers<[1], [0], [0], [1], [0, 0, 1, 1], [], []>} : vector<4x64xf32>, vector<64x192xf32>, vector<4x192xf32> -> vector<4x192xf32>
    %131 = vector.broadcast %22 : vector<1x192xf32> to vector<4x192xf32>
    %132 = arith.addf %130, %131 : vector<4x192xf32>
    %133 = vector.extract_strided_slice %129 {offsets = [0, 0], sizes = [4, 64], strides = [1, 1]} : vector<4x192xf32> to vector<4x64xf32>
    %134 = vector.extract_strided_slice %132 {offsets = [0, 0], sizes = [4, 64], strides = [1, 1]} : vector<4x192xf32> to vector<4x64xf32>
    %135 = arith.addf %133, %134 : vector<4x64xf32>
    %136 = arith.negf %135 : vector<4x64xf32>
    %137 = math.exp %136 : vector<4x64xf32>
    %cst_38 = arith.constant 1.000000e+00 : f32
    %138 = vector.broadcast %cst_38 : f32 to vector<4x64xf32>
    %139 = arith.addf %138, %137 : vector<4x64xf32>
    %140 = arith.divf %138, %139 : vector<4x64xf32>
    %141 = vector.extract_strided_slice %129 {offsets = [0, 64], sizes = [4, 64], strides = [1, 1]} : vector<4x192xf32> to vector<4x64xf32>
    %142 = vector.extract_strided_slice %132 {offsets = [0, 64], sizes = [4, 64], strides = [1, 1]} : vector<4x192xf32> to vector<4x64xf32>
    %143 = arith.addf %141, %142 : vector<4x64xf32>
    %144 = arith.negf %143 : vector<4x64xf32>
    %145 = math.exp %144 : vector<4x64xf32>
    %cst_39 = arith.constant 1.000000e+00 : f32
    %146 = vector.broadcast %cst_39 : f32 to vector<4x64xf32>
    %147 = arith.addf %146, %145 : vector<4x64xf32>
    %148 = arith.divf %146, %147 : vector<4x64xf32>
    %149 = vector.extract_strided_slice %129 {offsets = [0, 128], sizes = [4, 64], strides = [1, 1]} : vector<4x192xf32> to vector<4x64xf32>
    %150 = vector.extract_strided_slice %132 {offsets = [0, 128], sizes = [4, 64], strides = [1, 1]} : vector<4x192xf32> to vector<4x64xf32>
    %151 = arith.mulf %140, %150 : vector<4x64xf32>
    %152 = arith.addf %149, %151 : vector<4x64xf32>
    %153 = math.tanh %152 : vector<4x64xf32>
    %cst_40 = arith.constant 1.000000e+00 : f32
    %154 = vector.broadcast %cst_40 : f32 to vector<4x64xf32>
    %155 = arith.subf %154, %148 : vector<4x64xf32>
    %156 = arith.mulf %155, %153 : vector<4x64xf32>
    %157 = arith.mulf %148, %115 : vector<4x64xf32>
    %158 = arith.addf %156, %157 : vector<4x64xf32>
    %c7_i32_41 = arith.constant 7 : i32
    %159 = arith.subi %c7_i32_41, %c2_i32 : i32
    %160 = vector.broadcast %c2_i32 : i32 to vector<4x64xi32>
    %161 = vector.broadcast %159 : i32 to vector<4x64xi32>
    %162 = arith.select %5, %160, %161 : vector<4x64xi1>, vector<4x64xi32>
    %163 = arith.cmpi slt, %162, %2 : vector<4x64xi32>
    %164 = arith.select %163, %158, %115 : vector<4x64xi1>, vector<4x64xf32>
    %cst_42 = arith.constant 0.000000e+00 : f32
    %165 = vector.broadcast %cst_42 : f32 to vector<4x64xf32>
    %166 = arith.select %163, %164, %165 : vector<4x64xi1>, vector<4x64xf32>
    %167 = arith.index_cast %c2_i32 : i32 to index
    %c0_43 = arith.constant 0 : index
    %c0_44 = arith.constant 0 : index
    %168 = vector.load %arg6[%167, %c0_43, %c0_44] : memref<8x4x64xf32, #tpu.memory_space<vmem>>, vector<1x4x64xf32>
    %169 = vector.shape_cast %168 : vector<1x4x64xf32> to vector<4x64xf32>
    %170 = vector.shape_cast %166 : vector<4x64xf32> to vector<1x4x64xf32>
    tpu.vector_store %arg6[%167, %c0_43, %c0_44], %170 {strides = array<i32>} : memref<8x4x64xf32, #tpu.memory_space<vmem>>, vector<1x4x64xf32>,
    %c3_i32 = arith.constant 3 : i32
    %171 = arith.index_cast %c3_i32 : i32 to index
    %c0_45 = arith.constant 0 : index
    %c0_46 = arith.constant 0 : index
    %172 = vector.load %arg2[%171, %c0_45, %c0_46] : memref<8x4x192xf32, #tpu.memory_space<vmem>>, vector<1x4x192xf32>
    %173 = vector.shape_cast %172 : vector<1x4x192xf32> to vector<4x192xf32>
    %c7_i32_47 = arith.constant 7 : i32
    %174 = arith.subi %c7_i32_47, %c3_i32 : i32
    %175 = arith.index_cast %174 : i32 to index
    %c0_48 = arith.constant 0 : index
    %c0_49 = arith.constant 0 : index
    %176 = vector.load %arg2[%175, %c0_48, %c0_49] : memref<8x4x192xf32, #tpu.memory_space<vmem>>, vector<1x4x192xf32>
    %177 = vector.shape_cast %176 : vector<1x4x192xf32> to vector<4x192xf32>
    %178 = arith.select %20, %173, %177 : vector<4x192xi1>, vector<4x192xf32>
    %cst_50 = arith.constant dense<0.000000e+00> : vector<4x192xf32>
    %179 = tpu.matmul %164, %21, %cst_50 {dimension_numbers = #tpu.dot_dimension_numbers<[1], [0], [0], [1], [0, 0, 1, 1], [], []>} : vector<4x64xf32>, vector<64x192xf32>, vector<4x192xf32> -> vector<4x192xf32>
    %180 = vector.broadcast %22 : vector<1x192xf32> to vector<4x192xf32>
    %181 = arith.addf %179, %180 : vector<4x192xf32>
    %182 = vector.extract_strided_slice %178 {offsets = [0, 0], sizes = [4, 64], strides = [1, 1]} : vector<4x192xf32> to vector<4x64xf32>
    %183 = vector.extract_strided_slice %181 {offsets = [0, 0], sizes = [4, 64], strides = [1, 1]} : vector<4x192xf32> to vector<4x64xf32>
    %184 = arith.addf %182, %183 : vector<4x64xf32>
    %185 = arith.negf %184 : vector<4x64xf32>
    %186 = math.exp %185 : vector<4x64xf32>
    %cst_51 = arith.constant 1.000000e+00 : f32
    %187 = vector.broadcast %cst_51 : f32 to vector<4x64xf32>
    %188 = arith.addf %187, %186 : vector<4x64xf32>
    %189 = arith.divf %187, %188 : vector<4x64xf32>
    %190 = vector.extract_strided_slice %178 {offsets = [0, 64], sizes = [4, 64], strides = [1, 1]} : vector<4x192xf32> to vector<4x64xf32>
    %191 = vector.extract_strided_slice %181 {offsets = [0, 64], sizes = [4, 64], strides = [1, 1]} : vector<4x192xf32> to vector<4x64xf32>
    %192 = arith.addf %190, %191 : vector<4x64xf32>
    %193 = arith.negf %192 : vector<4x64xf32>
    %194 = math.exp %193 : vector<4x64xf32>
    %cst_52 = arith.constant 1.000000e+00 : f32
    %195 = vector.broadcast %cst_52 : f32 to vector<4x64xf32>
    %196 = arith.addf %195, %194 : vector<4x64xf32>
    %197 = arith.divf %195, %196 : vector<4x64xf32>
    %198 = vector.extract_strided_slice %178 {offsets = [0, 128], sizes = [4, 64], strides = [1, 1]} : vector<4x192xf32> to vector<4x64xf32>
    %199 = vector.extract_strided_slice %181 {offsets = [0, 128], sizes = [4, 64], strides = [1, 1]} : vector<4x192xf32> to vector<4x64xf32>
    %200 = arith.mulf %189, %199 : vector<4x64xf32>
    %201 = arith.addf %198, %200 : vector<4x64xf32>
    %202 = math.tanh %201 : vector<4x64xf32>
    %cst_53 = arith.constant 1.000000e+00 : f32
    %203 = vector.broadcast %cst_53 : f32 to vector<4x64xf32>
    %204 = arith.subf %203, %197 : vector<4x64xf32>
    %205 = arith.mulf %204, %202 : vector<4x64xf32>
    %206 = arith.mulf %197, %164 : vector<4x64xf32>
    %207 = arith.addf %205, %206 : vector<4x64xf32>
    %c7_i32_54 = arith.constant 7 : i32
    %208 = arith.subi %c7_i32_54, %c3_i32 : i32
    %209 = vector.broadcast %c3_i32 : i32 to vector<4x64xi32>
    %210 = vector.broadcast %208 : i32 to vector<4x64xi32>
    %211 = arith.select %5, %209, %210 : vector<4x64xi1>, vector<4x64xi32>
    %212 = arith.cmpi slt, %211, %2 : vector<4x64xi32>
    %213 = arith.select %212, %207, %164 : vector<4x64xi1>, vector<4x64xf32>
    %cst_55 = arith.constant 0.000000e+00 : f32
    %214 = vector.broadcast %cst_55 : f32 to vector<4x64xf32>
    %215 = arith.select %212, %213, %214 : vector<4x64xi1>, vector<4x64xf32>
    %216 = arith.index_cast %c3_i32 : i32 to index
    %c0_56 = arith.constant 0 : index
    %c0_57 = arith.constant 0 : index
    %217 = vector.load %arg6[%216, %c0_56, %c0_57] : memref<8x4x64xf32, #tpu.memory_space<vmem>>, vector<1x4x64xf32>
    %218 = vector.shape_cast %217 : vector<1x4x64xf32> to vector<4x64xf32>
    %219 = vector.shape_cast %215 : vector<4x64xf32> to vector<1x4x64xf32>
    tpu.vector_store %arg6[%216, %c0_56, %c0_57], %219 {strides = array<i32>} : memref<8x4x64xf32, #tpu.memory_space<vmem>>, vector<1x4x64xf32>,
    %c4_i32 = arith.constant 4 : i32
    %220 = arith.index_cast %c4_i32 : i32 to index
    %c0_58 = arith.constant 0 : index
    %c0_59 = arith.constant 0 : index
    %221 = vector.load %arg2[%220, %c0_58, %c0_59] : memref<8x4x192xf32, #tpu.memory_space<vmem>>, vector<1x4x192xf32>
    %222 = vector.shape_cast %221 : vector<1x4x192xf32> to vector<4x192xf32>
    %c7_i32_60 = arith.constant 7 : i32
    %223 = arith.subi %c7_i32_60, %c4_i32 : i32
    %224 = arith.index_cast %223 : i32 to index
    %c0_61 = arith.constant 0 : index
    %c0_62 = arith.constant 0 : index
    %225 = vector.load %arg2[%224, %c0_61, %c0_62] : memref<8x4x192xf32, #tpu.memory_space<vmem>>, vector<1x4x192xf32>
    %226 = vector.shape_cast %225 : vector<1x4x192xf32> to vector<4x192xf32>
    %227 = arith.select %20, %222, %226 : vector<4x192xi1>, vector<4x192xf32>
    %cst_63 = arith.constant dense<0.000000e+00> : vector<4x192xf32>
    %228 = tpu.matmul %213, %21, %cst_63 {dimension_numbers = #tpu.dot_dimension_numbers<[1], [0], [0], [1], [0, 0, 1, 1], [], []>} : vector<4x64xf32>, vector<64x192xf32>, vector<4x192xf32> -> vector<4x192xf32>
    %229 = vector.broadcast %22 : vector<1x192xf32> to vector<4x192xf32>
    %230 = arith.addf %228, %229 : vector<4x192xf32>
    %231 = vector.extract_strided_slice %227 {offsets = [0, 0], sizes = [4, 64], strides = [1, 1]} : vector<4x192xf32> to vector<4x64xf32>
    %232 = vector.extract_strided_slice %230 {offsets = [0, 0], sizes = [4, 64], strides = [1, 1]} : vector<4x192xf32> to vector<4x64xf32>
    %233 = arith.addf %231, %232 : vector<4x64xf32>
    %234 = arith.negf %233 : vector<4x64xf32>
    %235 = math.exp %234 : vector<4x64xf32>
    %cst_64 = arith.constant 1.000000e+00 : f32
    %236 = vector.broadcast %cst_64 : f32 to vector<4x64xf32>
    %237 = arith.addf %236, %235 : vector<4x64xf32>
    %238 = arith.divf %236, %237 : vector<4x64xf32>
    %239 = vector.extract_strided_slice %227 {offsets = [0, 64], sizes = [4, 64], strides = [1, 1]} : vector<4x192xf32> to vector<4x64xf32>
    %240 = vector.extract_strided_slice %230 {offsets = [0, 64], sizes = [4, 64], strides = [1, 1]} : vector<4x192xf32> to vector<4x64xf32>
    %241 = arith.addf %239, %240 : vector<4x64xf32>
    %242 = arith.negf %241 : vector<4x64xf32>
    %243 = math.exp %242 : vector<4x64xf32>
    %cst_65 = arith.constant 1.000000e+00 : f32
    %244 = vector.broadcast %cst_65 : f32 to vector<4x64xf32>
    %245 = arith.addf %244, %243 : vector<4x64xf32>
    %246 = arith.divf %244, %245 : vector<4x64xf32>
    %247 = vector.extract_strided_slice %227 {offsets = [0, 128], sizes = [4, 64], strides = [1, 1]} : vector<4x192xf32> to vector<4x64xf32>
    %248 = vector.extract_strided_slice %230 {offsets = [0, 128], sizes = [4, 64], strides = [1, 1]} : vector<4x192xf32> to vector<4x64xf32>
    %249 = arith.mulf %238, %248 : vector<4x64xf32>
    %250 = arith.addf %247, %249 : vector<4x64xf32>
    %251 = math.tanh %250 : vector<4x64xf32>
    %cst_66 = arith.constant 1.000000e+00 : f32
    %252 = vector.broadcast %cst_66 : f32 to vector<4x64xf32>
    %253 = arith.subf %252, %246 : vector<4x64xf32>
    %254 = arith.mulf %253, %251 : vector<4x64xf32>
    %255 = arith.mulf %246, %213 : vector<4x64xf32>
    %256 = arith.addf %254, %255 : vector<4x64xf32>
    %c7_i32_67 = arith.constant 7 : i32
    %257 = arith.subi %c7_i32_67, %c4_i32 : i32
    %258 = vector.broadcast %c4_i32 : i32 to vector<4x64xi32>
    %259 = vector.broadcast %257 : i32 to vector<4x64xi32>
    %260 = arith.select %5, %258, %259 : vector<4x64xi1>, vector<4x64xi32>
    %261 = arith.cmpi slt, %260, %2 : vector<4x64xi32>
    %262 = arith.select %261, %256, %213 : vector<4x64xi1>, vector<4x64xf32>
    %cst_68 = arith.constant 0.000000e+00 : f32
    %263 = vector.broadcast %cst_68 : f32 to vector<4x64xf32>
    %264 = arith.select %261, %262, %263 : vector<4x64xi1>, vector<4x64xf32>
    %265 = arith.index_cast %c4_i32 : i32 to index
    %c0_69 = arith.constant 0 : index
    %c0_70 = arith.constant 0 : index
    %266 = vector.load %arg6[%265, %c0_69, %c0_70] : memref<8x4x64xf32, #tpu.memory_space<vmem>>, vector<1x4x64xf32>
    %267 = vector.shape_cast %266 : vector<1x4x64xf32> to vector<4x64xf32>
    %268 = vector.shape_cast %264 : vector<4x64xf32> to vector<1x4x64xf32>
    tpu.vector_store %arg6[%265, %c0_69, %c0_70], %268 {strides = array<i32>} : memref<8x4x64xf32, #tpu.memory_space<vmem>>, vector<1x4x64xf32>,
    %c5_i32 = arith.constant 5 : i32
    %269 = arith.index_cast %c5_i32 : i32 to index
    %c0_71 = arith.constant 0 : index
    %c0_72 = arith.constant 0 : index
    %270 = vector.load %arg2[%269, %c0_71, %c0_72] : memref<8x4x192xf32, #tpu.memory_space<vmem>>, vector<1x4x192xf32>
    %271 = vector.shape_cast %270 : vector<1x4x192xf32> to vector<4x192xf32>
    %c7_i32_73 = arith.constant 7 : i32
    %272 = arith.subi %c7_i32_73, %c5_i32 : i32
    %273 = arith.index_cast %272 : i32 to index
    %c0_74 = arith.constant 0 : index
    %c0_75 = arith.constant 0 : index
    %274 = vector.load %arg2[%273, %c0_74, %c0_75] : memref<8x4x192xf32, #tpu.memory_space<vmem>>, vector<1x4x192xf32>
    %275 = vector.shape_cast %274 : vector<1x4x192xf32> to vector<4x192xf32>
    %276 = arith.select %20, %271, %275 : vector<4x192xi1>, vector<4x192xf32>
    %cst_76 = arith.constant dense<0.000000e+00> : vector<4x192xf32>
    %277 = tpu.matmul %262, %21, %cst_76 {dimension_numbers = #tpu.dot_dimension_numbers<[1], [0], [0], [1], [0, 0, 1, 1], [], []>} : vector<4x64xf32>, vector<64x192xf32>, vector<4x192xf32> -> vector<4x192xf32>
    %278 = vector.broadcast %22 : vector<1x192xf32> to vector<4x192xf32>
    %279 = arith.addf %277, %278 : vector<4x192xf32>
    %280 = vector.extract_strided_slice %276 {offsets = [0, 0], sizes = [4, 64], strides = [1, 1]} : vector<4x192xf32> to vector<4x64xf32>
    %281 = vector.extract_strided_slice %279 {offsets = [0, 0], sizes = [4, 64], strides = [1, 1]} : vector<4x192xf32> to vector<4x64xf32>
    %282 = arith.addf %280, %281 : vector<4x64xf32>
    %283 = arith.negf %282 : vector<4x64xf32>
    %284 = math.exp %283 : vector<4x64xf32>
    %cst_77 = arith.constant 1.000000e+00 : f32
    %285 = vector.broadcast %cst_77 : f32 to vector<4x64xf32>
    %286 = arith.addf %285, %284 : vector<4x64xf32>
    %287 = arith.divf %285, %286 : vector<4x64xf32>
    %288 = vector.extract_strided_slice %276 {offsets = [0, 64], sizes = [4, 64], strides = [1, 1]} : vector<4x192xf32> to vector<4x64xf32>
    %289 = vector.extract_strided_slice %279 {offsets = [0, 64], sizes = [4, 64], strides = [1, 1]} : vector<4x192xf32> to vector<4x64xf32>
    %290 = arith.addf %288, %289 : vector<4x64xf32>
    %291 = arith.negf %290 : vector<4x64xf32>
    %292 = math.exp %291 : vector<4x64xf32>
    %cst_78 = arith.constant 1.000000e+00 : f32
    %293 = vector.broadcast %cst_78 : f32 to vector<4x64xf32>
    %294 = arith.addf %293, %292 : vector<4x64xf32>
    %295 = arith.divf %293, %294 : vector<4x64xf32>
    %296 = vector.extract_strided_slice %276 {offsets = [0, 128], sizes = [4, 64], strides = [1, 1]} : vector<4x192xf32> to vector<4x64xf32>
    %297 = vector.extract_strided_slice %279 {offsets = [0, 128], sizes = [4, 64], strides = [1, 1]} : vector<4x192xf32> to vector<4x64xf32>
    %298 = arith.mulf %287, %297 : vector<4x64xf32>
    %299 = arith.addf %296, %298 : vector<4x64xf32>
    %300 = math.tanh %299 : vector<4x64xf32>
    %cst_79 = arith.constant 1.000000e+00 : f32
    %301 = vector.broadcast %cst_79 : f32 to vector<4x64xf32>
    %302 = arith.subf %301, %295 : vector<4x64xf32>
    %303 = arith.mulf %302, %300 : vector<4x64xf32>
    %304 = arith.mulf %295, %262 : vector<4x64xf32>
    %305 = arith.addf %303, %304 : vector<4x64xf32>
    %c7_i32_80 = arith.constant 7 : i32
    %306 = arith.subi %c7_i32_80, %c5_i32 : i32
    %307 = vector.broadcast %c5_i32 : i32 to vector<4x64xi32>
    %308 = vector.broadcast %306 : i32 to vector<4x64xi32>
    %309 = arith.select %5, %307, %308 : vector<4x64xi1>, vector<4x64xi32>
    %310 = arith.cmpi slt, %309, %2 : vector<4x64xi32>
    %311 = arith.select %310, %305, %262 : vector<4x64xi1>, vector<4x64xf32>
    %cst_81 = arith.constant 0.000000e+00 : f32
    %312 = vector.broadcast %cst_81 : f32 to vector<4x64xf32>
    %313 = arith.select %310, %311, %312 : vector<4x64xi1>, vector<4x64xf32>
    %314 = arith.index_cast %c5_i32 : i32 to index
    %c0_82 = arith.constant 0 : index
    %c0_83 = arith.constant 0 : index
    %315 = vector.load %arg6[%314, %c0_82, %c0_83] : memref<8x4x64xf32, #tpu.memory_space<vmem>>, vector<1x4x64xf32>
    %316 = vector.shape_cast %315 : vector<1x4x64xf32> to vector<4x64xf32>
    %317 = vector.shape_cast %313 : vector<4x64xf32> to vector<1x4x64xf32>
    tpu.vector_store %arg6[%314, %c0_82, %c0_83], %317 {strides = array<i32>} : memref<8x4x64xf32, #tpu.memory_space<vmem>>, vector<1x4x64xf32>,
    %c6_i32 = arith.constant 6 : i32
    %318 = arith.index_cast %c6_i32 : i32 to index
    %c0_84 = arith.constant 0 : index
    %c0_85 = arith.constant 0 : index
    %319 = vector.load %arg2[%318, %c0_84, %c0_85] : memref<8x4x192xf32, #tpu.memory_space<vmem>>, vector<1x4x192xf32>
    %320 = vector.shape_cast %319 : vector<1x4x192xf32> to vector<4x192xf32>
    %c7_i32_86 = arith.constant 7 : i32
    %321 = arith.subi %c7_i32_86, %c6_i32 : i32
    %322 = arith.index_cast %321 : i32 to index
    %c0_87 = arith.constant 0 : index
    %c0_88 = arith.constant 0 : index
    %323 = vector.load %arg2[%322, %c0_87, %c0_88] : memref<8x4x192xf32, #tpu.memory_space<vmem>>, vector<1x4x192xf32>
    %324 = vector.shape_cast %323 : vector<1x4x192xf32> to vector<4x192xf32>
    %325 = arith.select %20, %320, %324 : vector<4x192xi1>, vector<4x192xf32>
    %cst_89 = arith.constant dense<0.000000e+00> : vector<4x192xf32>
    %326 = tpu.matmul %311, %21, %cst_89 {dimension_numbers = #tpu.dot_dimension_numbers<[1], [0], [0], [1], [0, 0, 1, 1], [], []>} : vector<4x64xf32>, vector<64x192xf32>, vector<4x192xf32> -> vector<4x192xf32>
    %327 = vector.broadcast %22 : vector<1x192xf32> to vector<4x192xf32>
    %328 = arith.addf %326, %327 : vector<4x192xf32>
    %329 = vector.extract_strided_slice %325 {offsets = [0, 0], sizes = [4, 64], strides = [1, 1]} : vector<4x192xf32> to vector<4x64xf32>
    %330 = vector.extract_strided_slice %328 {offsets = [0, 0], sizes = [4, 64], strides = [1, 1]} : vector<4x192xf32> to vector<4x64xf32>
    %331 = arith.addf %329, %330 : vector<4x64xf32>
    %332 = arith.negf %331 : vector<4x64xf32>
    %333 = math.exp %332 : vector<4x64xf32>
    %cst_90 = arith.constant 1.000000e+00 : f32
    %334 = vector.broadcast %cst_90 : f32 to vector<4x64xf32>
    %335 = arith.addf %334, %333 : vector<4x64xf32>
    %336 = arith.divf %334, %335 : vector<4x64xf32>
    %337 = vector.extract_strided_slice %325 {offsets = [0, 64], sizes = [4, 64], strides = [1, 1]} : vector<4x192xf32> to vector<4x64xf32>
    %338 = vector.extract_strided_slice %328 {offsets = [0, 64], sizes = [4, 64], strides = [1, 1]} : vector<4x192xf32> to vector<4x64xf32>
    %339 = arith.addf %337, %338 : vector<4x64xf32>
    %340 = arith.negf %339 : vector<4x64xf32>
    %341 = math.exp %340 : vector<4x64xf32>
    %cst_91 = arith.constant 1.000000e+00 : f32
    %342 = vector.broadcast %cst_91 : f32 to vector<4x64xf32>
    %343 = arith.addf %342, %341 : vector<4x64xf32>
    %344 = arith.divf %342, %343 : vector<4x64xf32>
    %345 = vector.extract_strided_slice %325 {offsets = [0, 128], sizes = [4, 64], strides = [1, 1]} : vector<4x192xf32> to vector<4x64xf32>
    %346 = vector.extract_strided_slice %328 {offsets = [0, 128], sizes = [4, 64], strides = [1, 1]} : vector<4x192xf32> to vector<4x64xf32>
    %347 = arith.mulf %336, %346 : vector<4x64xf32>
    %348 = arith.addf %345, %347 : vector<4x64xf32>
    %349 = math.tanh %348 : vector<4x64xf32>
    %cst_92 = arith.constant 1.000000e+00 : f32
    %350 = vector.broadcast %cst_92 : f32 to vector<4x64xf32>
    %351 = arith.subf %350, %344 : vector<4x64xf32>
    %352 = arith.mulf %351, %349 : vector<4x64xf32>
    %353 = arith.mulf %344, %311 : vector<4x64xf32>
    %354 = arith.addf %352, %353 : vector<4x64xf32>
    %c7_i32_93 = arith.constant 7 : i32
    %355 = arith.subi %c7_i32_93, %c6_i32 : i32
    %356 = vector.broadcast %c6_i32 : i32 to vector<4x64xi32>
    %357 = vector.broadcast %355 : i32 to vector<4x64xi32>
    %358 = arith.select %5, %356, %357 : vector<4x64xi1>, vector<4x64xi32>
    %359 = arith.cmpi slt, %358, %2 : vector<4x64xi32>
    %360 = arith.select %359, %354, %311 : vector<4x64xi1>, vector<4x64xf32>
    %cst_94 = arith.constant 0.000000e+00 : f32
    %361 = vector.broadcast %cst_94 : f32 to vector<4x64xf32>
    %362 = arith.select %359, %360, %361 : vector<4x64xi1>, vector<4x64xf32>
    %363 = arith.index_cast %c6_i32 : i32 to index
    %c0_95 = arith.constant 0 : index
    %c0_96 = arith.constant 0 : index
    %364 = vector.load %arg6[%363, %c0_95, %c0_96] : memref<8x4x64xf32, #tpu.memory_space<vmem>>, vector<1x4x64xf32>
    %365 = vector.shape_cast %364 : vector<1x4x64xf32> to vector<4x64xf32>
    %366 = vector.shape_cast %362 : vector<4x64xf32> to vector<1x4x64xf32>
    tpu.vector_store %arg6[%363, %c0_95, %c0_96], %366 {strides = array<i32>} : memref<8x4x64xf32, #tpu.memory_space<vmem>>, vector<1x4x64xf32>,
    %c7_i32_97 = arith.constant 7 : i32
    %367 = arith.index_cast %c7_i32_97 : i32 to index
    %c0_98 = arith.constant 0 : index
    %c0_99 = arith.constant 0 : index
    %368 = vector.load %arg2[%367, %c0_98, %c0_99] : memref<8x4x192xf32, #tpu.memory_space<vmem>>, vector<1x4x192xf32>
    %369 = vector.shape_cast %368 : vector<1x4x192xf32> to vector<4x192xf32>
    %c7_i32_100 = arith.constant 7 : i32
    %370 = arith.subi %c7_i32_100, %c7_i32_97 : i32
    %371 = arith.index_cast %370 : i32 to index
    %c0_101 = arith.constant 0 : index
    %c0_102 = arith.constant 0 : index
    %372 = vector.load %arg2[%371, %c0_101, %c0_102] : memref<8x4x192xf32, #tpu.memory_space<vmem>>, vector<1x4x192xf32>
    %373 = vector.shape_cast %372 : vector<1x4x192xf32> to vector<4x192xf32>
    %374 = arith.select %20, %369, %373 : vector<4x192xi1>, vector<4x192xf32>
    %cst_103 = arith.constant dense<0.000000e+00> : vector<4x192xf32>
    %375 = tpu.matmul %360, %21, %cst_103 {dimension_numbers = #tpu.dot_dimension_numbers<[1], [0], [0], [1], [0, 0, 1, 1], [], []>} : vector<4x64xf32>, vector<64x192xf32>, vector<4x192xf32> -> vector<4x192xf32>
    %376 = vector.broadcast %22 : vector<1x192xf32> to vector<4x192xf32>
    %377 = arith.addf %375, %376 : vector<4x192xf32>
    %378 = vector.extract_strided_slice %374 {offsets = [0, 0], sizes = [4, 64], strides = [1, 1]} : vector<4x192xf32> to vector<4x64xf32>
    %379 = vector.extract_strided_slice %377 {offsets = [0, 0], sizes = [4, 64], strides = [1, 1]} : vector<4x192xf32> to vector<4x64xf32>
    %380 = arith.addf %378, %379 : vector<4x64xf32>
    %381 = arith.negf %380 : vector<4x64xf32>
    %382 = math.exp %381 : vector<4x64xf32>
    %cst_104 = arith.constant 1.000000e+00 : f32
    %383 = vector.broadcast %cst_104 : f32 to vector<4x64xf32>
    %384 = arith.addf %383, %382 : vector<4x64xf32>
    %385 = arith.divf %383, %384 : vector<4x64xf32>
    %386 = vector.extract_strided_slice %374 {offsets = [0, 64], sizes = [4, 64], strides = [1, 1]} : vector<4x192xf32> to vector<4x64xf32>
    %387 = vector.extract_strided_slice %377 {offsets = [0, 64], sizes = [4, 64], strides = [1, 1]} : vector<4x192xf32> to vector<4x64xf32>
    %388 = arith.addf %386, %387 : vector<4x64xf32>
    %389 = arith.negf %388 : vector<4x64xf32>
    %390 = math.exp %389 : vector<4x64xf32>
    %cst_105 = arith.constant 1.000000e+00 : f32
    %391 = vector.broadcast %cst_105 : f32 to vector<4x64xf32>
    %392 = arith.addf %391, %390 : vector<4x64xf32>
    %393 = arith.divf %391, %392 : vector<4x64xf32>
    %394 = vector.extract_strided_slice %374 {offsets = [0, 128], sizes = [4, 64], strides = [1, 1]} : vector<4x192xf32> to vector<4x64xf32>
    %395 = vector.extract_strided_slice %377 {offsets = [0, 128], sizes = [4, 64], strides = [1, 1]} : vector<4x192xf32> to vector<4x64xf32>
    %396 = arith.mulf %385, %395 : vector<4x64xf32>
    %397 = arith.addf %394, %396 : vector<4x64xf32>
    %398 = math.tanh %397 : vector<4x64xf32>
    %cst_106 = arith.constant 1.000000e+00 : f32
    %399 = vector.broadcast %cst_106 : f32 to vector<4x64xf32>
    %400 = arith.subf %399, %393 : vector<4x64xf32>
    %401 = arith.mulf %400, %398 : vector<4x64xf32>
    %402 = arith.mulf %393, %360 : vector<4x64xf32>
    %403 = arith.addf %401, %402 : vector<4x64xf32>
    %c7_i32_107 = arith.constant 7 : i32
    %404 = arith.subi %c7_i32_107, %c7_i32_97 : i32
    %405 = vector.broadcast %c7_i32_97 : i32 to vector<4x64xi32>
    %406 = vector.broadcast %404 : i32 to vector<4x64xi32>
    %407 = arith.select %5, %405, %406 : vector<4x64xi1>, vector<4x64xi32>
    %408 = arith.cmpi slt, %407, %2 : vector<4x64xi32>
    %409 = arith.select %408, %403, %360 : vector<4x64xi1>, vector<4x64xf32>
    %cst_108 = arith.constant 0.000000e+00 : f32
    %410 = vector.broadcast %cst_108 : f32 to vector<4x64xf32>
    %411 = arith.select %408, %409, %410 : vector<4x64xi1>, vector<4x64xf32>
    %412 = arith.index_cast %c7_i32_97 : i32 to index
    %c0_109 = arith.constant 0 : index
    %c0_110 = arith.constant 0 : index
    %413 = vector.load %arg6[%412, %c0_109, %c0_110] : memref<8x4x64xf32, #tpu.memory_space<vmem>>, vector<1x4x64xf32>
    %414 = vector.shape_cast %413 : vector<1x4x64xf32> to vector<4x64xf32>
    %415 = vector.shape_cast %411 : vector<4x64xf32> to vector<1x4x64xf32>
    tpu.vector_store %arg6[%412, %c0_109, %c0_110], %415 {strides = array<i32>} : memref<8x4x64xf32, #tpu.memory_space<vmem>>, vector<1x4x64xf32>,
    %c8_i32 = arith.constant 8 : i32
    %c0_111 = arith.constant 0 : index
    %c0_112 = arith.constant 0 : index
    %416 = vector.load %arg7[%c0_111, %c0_112] : memref<4x64xf32, #tpu.memory_space<vmem>>, vector<4x64xf32>
    tpu.vector_store %arg7[%c0_111, %c0_112], %409 {strides = array<i32>} : memref<4x64xf32, #tpu.memory_space<vmem>>, vector<4x64xf32>,
    return
  }
  func.func @transform_0(%arg0: i32) -> (i32, i32) {
    %c0_i32 = arith.constant 0 : i32
    %c0_i32_0 = arith.constant 0 : i32
    %c0_i32_1 = arith.constant 0 : i32
    return %c0_i32, %c0_i32_0 : i32, i32
  }
  func.func @transform_1(%arg0: i32) -> (i32, i32, i32) {
    %c0_i32 = arith.constant 0 : i32
    %c0_i32_0 = arith.constant 0 : i32
    %c0_i32_1 = arith.constant 0 : i32
    %c0_i32_2 = arith.constant 0 : i32
    return %c0_i32, %c0_i32_0, %c0_i32_1 : i32, i32, i32
  }
  func.func @transform_2(%arg0: i32) -> (i32, i32) {
    %c0_i32 = arith.constant 0 : i32
    %c0_i32_0 = arith.constant 0 : i32
    %c0_i32_1 = arith.constant 0 : i32
    return %c0_i32, %c0_i32_0 : i32, i32
  }
  func.func @transform_3(%arg0: i32) -> (i32, i32) {
    %c0_i32 = arith.constant 0 : i32
    %c0_i32_0 = arith.constant 0 : i32
    %c0_i32_1 = arith.constant 0 : i32
    return %c0_i32, %c0_i32_0 : i32, i32
  }
  func.func @transform_4(%arg0: i32) -> (i32, i32) {
    %c0_i32 = arith.constant 0 : i32
    %c0_i32_0 = arith.constant 0 : i32
    %c0_i32_1 = arith.constant 0 : i32
    return %c0_i32, %c0_i32_0 : i32, i32
  }
  func.func @transform_5(%arg0: i32) -> (i32, i32, i32) {
    %c0_i32 = arith.constant 0 : i32
    %c0_i32_0 = arith.constant 0 : i32
    %c0_i32_1 = arith.constant 0 : i32
    %c0_i32_2 = arith.constant 0 : i32
    return %c0_i32, %c0_i32_0, %c0_i32_1 : i32, i32, i32
  }
  func.func @transform_6(%arg0: i32) -> (i32, i32) {
    %c0_i32 = arith.constant 0 : i32
    %c0_i32_0 = arith.constant 0 : i32
    %c0_i32_1 = arith.constant 0 : i32
    return %c0_i32, %c0_i32_0 : i32, i32
  }
}

</mosaic_0001>

<llo_original>
// kernel: tpu_custom_call.1
$region0: #{tpu_custom_call.1}
  #allocation0 [shape = 'u32[]', space=smem, size = 0x4, offset = 0x4, fixed_abs, tag = 'smem constant byte address 0x4 - core index']
  #allocation1 [shape = 'u32[144,128]{1,0:T(1,128)}', space=vmem, size = 0x12000, scoped, tag = 'internal scratch']
  %s0 = inlined_call_operand.vmem [shape: s32[4,1], index: 0, kind: input, shape index: {}]
  %s1 = inlined_call_operand.hbm [shape: f32[8,4,192], index: 1, kind: input, shape index: {}]
  %s2 = inlined_call_operand.vmem [shape: f32[4,64], index: 2, kind: input, shape index: {}]
  %s3 = inlined_call_operand.hbm [shape: f32[64,192], index: 3, kind: input, shape index: {}]
  %s4 = inlined_call_operand.vmem [shape: f32[1,192], index: 4, kind: input, shape index: {}]
  %s5 = inlined_call_operand.hbm [shape: f32[8,4,64], index: 5, kind: output, shape index: {0}]
  %s6 = inlined_call_operand.hbm [shape: f32[4,64], index: 6, kind: output, shape index: {1}]
  %7 = xla_tuple %s5, %s6
  %s8 = sld [smem:[#allocation0]]
  $region46: #{tpu_custom_call.1} parent=0
    _
  %s10 = ssub.s32 1, %s8
  %s11 = scalar_select 0, %s10, %s8
  $region1: #{tpu_custom_call.1} parent=0
    #allocation2 [shape = 'u8[32768]{0}', space=vmem, size = 0x8000, scoped, tag = 'input window, operand 1, single buffered']
    #allocation3 [shape = 's32[1]{0}', space=sflag, size = 0x4, scoped, tag = 'scoped memory for tpu_custom_call.1']
    #allocation4 [shape = 's32[1]{0}', space=sflag, size = 0x4, scoped, tag = 'scoped memory for tpu_custom_call.1']
    #allocation5 [shape = 'u8[65536]{0}', space=vmem, size = 0x10000, scoped, tag = 'input window, operand 3, single buffered']
    #allocation6 [shape = 's32[1]{0}', space=sflag, size = 0x4, scoped, tag = 'scoped memory for tpu_custom_call.1']
    #allocation7 [shape = 'u8[16384]{0}', space=vmem, size = 0x4000, scoped, tag = 'output window, operand 0, single buffered']
    #allocation8 [shape = 'u8[2048]{0}', space=vmem, size = 0x800, scoped, tag = 'output window, operand 1, single buffered']
    #allocation9 [shape = 's32[1]{0}', space=sflag, size = 0x4, scoped, tag = 'scoped memory for tpu_custom_call.1']
    %12 = vsyncpa [#allocation3], 0
    %13 = vsyncpa [#allocation6], 0
    %14 = vsyncpa [#allocation4], 0
    %15 = vsyncpa [#allocation9], 0
    // Predicated region
    $region2: #{tpu_custom_call.1} parent=1 // pred_check
      _
    $region3: #{tpu_custom_call.1} parent=1 // pred_check_branch
      %17 = sbr.rel (0) target = $region5
    $region4: #{tpu_custom_call.1} parent=1 // pred_region
      _
    $region5: #{tpu_custom_call.1} parent=1 // pred_fallthru
      _
    // Predicated region
    $region6: #{tpu_custom_call.1} parent=1 // pred_check
      _
    $region7: #{tpu_custom_call.1} parent=1 // pred_check_branch
      %19 = sbr.rel (0) target = $region9
    $region8: #{tpu_custom_call.1} parent=1 // pred_region
      %s21 = ssub.s32 1024, 1024
      %22 = vsyncadd [#allocation3], %s21
      %s23 = sshll.u32 [#allocation2], 4
      %s24 = int_to_ptr.vmem [resolvable:$true] %s23
      %29 = dma.hbm_to_vmem [thread:$0]  %s1, 1024, %s24, [#allocation3], 128, 128, 8
    $region9: #{tpu_custom_call.1} parent=1 // pred_fallthru
      _
    // Predicated region
    $region10: #{tpu_custom_call.1} parent=1 // pred_check
      _
    $region11: #{tpu_custom_call.1} parent=1 // pred_check_branch
      %31 = sbr.rel (0) target = $region13
    $region12: #{tpu_custom_call.1} parent=1 // pred_region
      _
    $region13: #{tpu_custom_call.1} parent=1 // pred_fallthru
      _
    // Predicated region
    $region14: #{tpu_custom_call.1} parent=1 // pred_check
      _
    $region15: #{tpu_custom_call.1} parent=1 // pred_check_branch
      %33 = sbr.rel (0) target = $region17
    $region16: #{tpu_custom_call.1} parent=1 // pred_region
      %s35 = ssub.s32 2048, 2048
      %36 = vsyncadd [#allocation6], %s35
      %s37 = sshll.u32 [#allocation5], 4
      %s38 = int_to_ptr.vmem [resolvable:$true] %s37
      %43 = dma.hbm_to_vmem [thread:$0]  %s3, 2048, %s38, [#allocation6], 256, 256, 16
    $region17: #{tpu_custom_call.1} parent=1 // pred_fallthru
      _
    // Predicated region
    $region18: #{tpu_custom_call.1} parent=1 // pred_check
      _
    $region19: #{tpu_custom_call.1} parent=1 // pred_check_branch
      %45 = sbr.rel (0) target = $region21
    $region20: #{tpu_custom_call.1} parent=1 // pred_region
      _
    $region21: #{tpu_custom_call.1} parent=1 // pred_fallthru
      _
    // Predicated region
    $region22: #{tpu_custom_call.1} parent=1 // pred_check
      _
    $region23: #{tpu_custom_call.1} parent=1 // pred_check_branch
      %47 = sbr.rel (0) target = $region25
    $region24: #{tpu_custom_call.1} parent=1 // pred_region
      %48 = dma.done [#allocation3], 1024
    $region25: #{tpu_custom_call.1} parent=1 // pred_fallthru
      _
    // Predicated region
    $region26: #{tpu_custom_call.1} parent=1 // pred_check
      _
    $region27: #{tpu_custom_call.1} parent=1 // pred_check_branch
      %50 = sbr.rel (0) target = $region29
    $region28: #{tpu_custom_call.1} parent=1 // pred_region
      %51 = dma.done [#allocation6], 2048
    $region29: #{tpu_custom_call.1} parent=1 // pred_fallthru
      _
    %v52 = vld [vmem:[%s0] sm:$0xf]
    %53 = vset.pattern.permute.xlu0 0
    %54 = vperm.xlu0 %53, %v52
    %v55 = vpop.permute.xlu0 %54
    %v56 = vlaneseq
    %v57 = vand.u32 %v56, 127
    %vm58 = vcmp.lt.s32.totalorder %v57, 32
    %v59 = vadd.s32 %v57, 128
    %vm60 = vcmp.lt.s32.totalorder %v59, 32
    %vm61 = vcmp.ge.s32.totalorder %v57, 64
    %vm62 = vcmp.ge.s32.totalorder %v59, 64
    %vm63 = vcmp.lt.s32.totalorder %v57, 96
    %vm64 = vcmp.lt.s32.totalorder %v59, 96
    %vm65 = vmand %vm61, %vm63
    %vm66 = vmand %vm62, %vm64
    %vm67 = vmor %vm58, %vm65
    %vm68 = vmor %vm60, %vm66
    %vm69 = vcmp.ge.s32.totalorder %v57, 128
    %vm70 = vcmp.ge.s32.totalorder %v59, 128
    %vm71 = vcmp.lt.s32.totalorder %v57, 160
    %vm72 = vcmp.lt.s32.totalorder %v59, 160
    %vm73 = vmand %vm69, %vm71
    %vm74 = vmand %vm70, %vm72
    %vm75 = vmor %vm67, %vm73
    %vm76 = vmor %vm68, %vm74
    %v77 = vld [vmem:[#allocation5] sm:$0xff]
    %v78 = vld [vmem:[#allocation5 + $0x8] sm:$0xff]
    %v79 = vld [vmem:[#allocation5 + $0x10] sm:$0xff]
    %v80 = vld [vmem:[#allocation5 + $0x18] sm:$0xff]
    %v81 = vld [vmem:[#allocation5 + $0x20] sm:$0xff]
    %v82 = vld [vmem:[#allocation5 + $0x28] sm:$0xff]
    %v83 = vld [vmem:[#allocation5 + $0x30] sm:$0xff]
    %v84 = vld [vmem:[#allocation5 + $0x38] sm:$0xff]
    %v85 = vld [vmem:[#allocation5 + $0x40] sm:$0xff]
    %v86 = vld [vmem:[#allocation5 + $0x48] sm:$0xff]
    %v87 = vld [vmem:[#allocation5 + $0x50] sm:$0xff]
    %v88 = vld [vmem:[#allocation5 + $0x58] sm:$0xff]
    %v89 = vld [vmem:[#allocation5 + $0x60] sm:$0xff]
    %v90 = vld [vmem:[#allocation5 + $0x68] sm:$0xff]
    %v91 = vld [vmem:[#allocation5 + $0x70] sm:$0xff]
    %v92 = vld [vmem:[#allocation5 + $0x78] sm:$0xff]
    %v93 = vld [vmem:[%s4] sm:$0x3]
    %v94 = vld [vmem:[%s2] sm:$0xf]
    %v95 = vld [vmem:[#allocation2] sm:$0xff]
    %s96 = scalar_lea.vmem [#allocation2], 56
    %v97 = vld [vmem:[%s96] sm:$0xff]
    %v99 = vcombine.high %v95, %v95
    %v102 = vcombine.high %v97, %v97
    %v104 = vsel %vm75, %v95, %v97
    %v105 = vsel %vm76, %v99, %v102
    %v107 = vlaneseq
    %v108 = vshrl.u32 %v107, 7
    %v109 = vsub.s32 0, %v108
    %v110 = vrot.slane %v93, %v109
    %v111 = vlaneseq
    %v112 = vshrl.u32 %v111, 7
    %v113 = vsub.s32 1, %v112
    %v114 = vrot.slane %v93, %v113
    %vm117 = vcmask 523264
    %v119 = vsel %vm117, %v94, 0
    %121 = vmatprep.subr.mxu0 0.0
    %122 = vmatpush1.msra.mxu0 0.0
    %123 = vmatprep.subr.mxu0 0.0
    %124 = vmatpush1.msra.mxu0 0.0
    %125 = vmatprep.subr.mxu0 0.0
    %126 = vmatpush1.msra.mxu0 0.0
    %127 = vmatprep.subr.mxu0 0.0
    %128 = vmatpush1.msra.mxu0 0.0
    %129 = vmatprep.subr.mxu0 0.0
    %130 = vmatpush1.msra.mxu0 0.0
    %131 = vmatprep.subr.mxu0 0.0
    %132 = vmatpush1.msra.mxu0 0.0
    %133 = vmatprep.subr.mxu0 0.0
    %134 = vmatpush1.msra.mxu0 0.0
    %135 = vmatprep.subr.mxu0 0.0
    %136 = vmatpush1.msra.mxu0 0.0
    %137 = vmatprep.subr.mxu0 %v92
    %138 = vmatpush1.msra.mxu0 %v91
    %139 = vmatprep.subr.mxu0 %v90
    %140 = vmatpush1.msra.mxu0 %v89
    %141 = vmatprep.subr.mxu0 %v88
    %142 = vmatpush1.msra.mxu0 %v87
    %143 = vmatprep.subr.mxu0 %v86
    %144 = vmatpush1.msra.mxu0 %v85
    %145 = vmatprep.subr.mxu0 %v84
    %146 = vmatpush1.msra.mxu0 %v83
    %147 = vmatprep.subr.mxu0 %v82
    %148 = vmatpush1.msra.mxu0 %v81
    %149 = vmatprep.subr.mxu0 %v80
    %150 = vmatpush1.msra.mxu0 %v79
    %151 = vmatprep.subr.mxu0 %v78
    %152 = vmatpush1.msra.mxu0 %v77
    %153 = vmatprep.subr.mxu0 0.0
    %154 = vmatpush2.msra.mxu0 0.0
    %155 = vmatprep.subr.mxu0 0.0
    %156 = vmatpush2.msra.mxu0 0.0
    %157 = vmatprep.subr.mxu0 0.0
    %158 = vmatpush2.msra.mxu0 0.0
    %159 = vmatprep.subr.mxu0 0.0
    %160 = vmatpush2.msra.mxu0 0.0
    %161 = vmatprep.subr.mxu0 0.0
    %162 = vmatpush2.msra.mxu0 0.0
    %163 = vmatprep.subr.mxu0 0.0
    %164 = vmatpush2.msra.mxu0 0.0
    %165 = vmatprep.subr.mxu0 0.0
    %166 = vmatpush2.msra.mxu0 0.0
    %167 = vmatprep.subr.mxu0 0.0
    %168 = vmatpush2.msra.mxu0 0.0
    %169 = vmatprep.subr.mxu0 0.0
    %170 = vmatpush2.msra.mxu0 0.0
    %171 = vmatprep.subr.mxu0 0.0
    %172 = vmatpush2.msra.mxu0 0.0
    %173 = vmatprep.subr.mxu0 0.0
    %174 = vmatpush2.msra.mxu0 0.0
    %175 = vmatprep.subr.mxu0 0.0
    %176 = vmatpush2.msra.mxu0 0.0
    %177 = vmatprep.subr.mxu0 0.0
    %178 = vmatpush2.msra.mxu0 0.0
    %179 = vmatprep.subr.mxu0 0.0
    %180 = vmatpush2.msra.mxu0 0.0
    %181 = vmatprep.subr.mxu0 0.0
    %182 = vmatpush2.msra.mxu0 0.0
    %183 = vmatprep.subr.mxu0 0.0
    %184 = vmatpush2.msra.mxu0 0.0
    %185 = vmatprep.mubr.f32.mxu0 0.0
    %186 = vmatmul.mubr.f32.gmra.mxu0 %v119
    %v187 = vpop.f32.mrf.mxu0
    %v188 = vadd.f32 %v110, %v187
    %v189 = vpop.f32.mrf.mxu0
    %v190 = vadd.f32 %v114, %v189
    %191 = vdwg.mxu0
    %v192 = vadd.f32 %v104, %v188
    %v193 = vxor.u32 %v192, 2147483648
    %v194 = vmul.f32 %v193, 1.442695
    %v195 = vpow.pop %v194
    %v196 = vadd.f32 %v195, 1.0
    %v197 = vrcp.pop %v196
    %v198 = vmul.f32 1.0, %v197
    %v199 = vmul.f32 %v198, %v190
    %v200 = vadd.f32 %v105, %v199
    %v201 = vtanh.pop %v200
    %v202 = vsub.f32 1.0, %v198
    %204 = vrot.lane.b32.xlu0 %v201, 64
    %v205 = vpop.permute.xlu0 %204
    %v207 = vmul.f32 %v202, %v205
    %208 = vrot.lane.b32.xlu0 %v94, 64
    %v209 = vpop.permute.xlu0 %208
    %v211 = vmul.f32 %v198, %v209
    %v212 = vadd.f32 %v207, %v211
    %v213 = vsel %vm58, 0, 7
    %vm214 = vcmp.lt.s32.totalorder %v213, %v55
    %216 = vrot.lane.b32.xlu0 %v212, 64
    %v217 = vpop.permute.xlu0 %216
    %v219 = vsel %vm214, %v217, %v94
    %v220 = vsel %vm214, %v217, 0.0
    %vm221 = vcmask 519168
    %222 = vst.msk [vmem:[#allocation7] sm:$0xf] %vm221, %v220
    %s223 = scalar_lea.vmem [#allocation2], 8
    %v224 = vld [vmem:[%s223] sm:$0xff]
    %s225 = scalar_lea.vmem [#allocation2], 48
    %v226 = vld [vmem:[%s225] sm:$0xff]
    %v228 = vcombine.high %v224, %v224
    %v231 = vcombine.high %v226, %v226
    %v233 = vsel %vm75, %v224, %v226
    %v234 = vsel %vm76, %v228, %v231
    %v236 = vsel %vm117, %v219, 0
    %238 = vmatprep.subr.mxu0 0.0
    %239 = vmatpush1.msra.mxu0 0.0
    %240 = vmatprep.subr.mxu0 0.0
    %241 = vmatpush1.msra.mxu0 0.0
    %242 = vmatprep.subr.mxu0 0.0
    %243 = vmatpush1.msra.mxu0 0.0
    %244 = vmatprep.subr.mxu0 0.0
    %245 = vmatpush1.msra.mxu0 0.0
    %246 = vmatprep.subr.mxu0 0.0
    %247 = vmatpush1.msra.mxu0 0.0
    %248 = vmatprep.subr.mxu0 0.0
    %249 = vmatpush1.msra.mxu0 0.0
    %250 = vmatprep.subr.mxu0 0.0
    %251 = vmatpush1.msra.mxu0 0.0
    %252 = vmatprep.subr.mxu0 0.0
    %253 = vmatpush1.msra.mxu0 0.0
    %254 = vmatprep.subr.mxu0 %v92
    %255 = vmatpush1.msra.mxu0 %v91
    %256 = vmatprep.subr.mxu0 %v90
    %257 = vmatpush1.msra.mxu0 %v89
    %258 = vmatprep.subr.mxu0 %v88
    %259 = vmatpush1.msra.mxu0 %v87
    %260 = vmatprep.subr.mxu0 %v86
    %261 = vmatpush1.msra.mxu0 %v85
    %262 = vmatprep.subr.mxu0 %v84
    %263 = vmatpush1.msra.mxu0 %v83
    %264 = vmatprep.subr.mxu0 %v82
    %265 = vmatpush1.msra.mxu0 %v81
    %266 = vmatprep.subr.mxu0 %v80
    %267 = vmatpush1.msra.mxu0 %v79
    %268 = vmatprep.subr.mxu0 %v78
    %269 = vmatpush1.msra.mxu0 %v77
    %270 = vmatprep.subr.mxu0 0.0
    %271 = vmatpush2.msra.mxu0 0.0
    %272 = vmatprep.subr.mxu0 0.0
    %273 = vmatpush2.msra.mxu0 0.0
    %274 = vmatprep.subr.mxu0 0.0
    %275 = vmatpush2.msra.mxu0 0.0
    %276 = vmatprep.subr.mxu0 0.0
    %277 = vmatpush2.msra.mxu0 0.0
    %278 = vmatprep.subr.mxu0 0.0
    %279 = vmatpush2.msra.mxu0 0.0
    %280 = vmatprep.subr.mxu0 0.0
    %281 = vmatpush2.msra.mxu0 0.0
    %282 = vmatprep.subr.mxu0 0.0
    %283 = vmatpush2.msra.mxu0 0.0
    %284 = vmatprep.subr.mxu0 0.0
    %285 = vmatpush2.msra.mxu0 0.0
    %286 = vmatprep.subr.mxu0 0.0
    %287 = vmatpush2.msra.mxu0 0.0
    %288 = vmatprep.subr.mxu0 0.0
    %289 = vmatpush2.msra.mxu0 0.0
    %290 = vmatprep.subr.mxu0 0.0
    %291 = vmatpush2.msra.mxu0 0.0
    %292 = vmatprep.subr.mxu0 0.0
    %293 = vmatpush2.msra.mxu0 0.0
    %294 = vmatprep.subr.mxu0 0.0
    %295 = vmatpush2.msra.mxu0 0.0
    %296 = vmatprep.subr.mxu0 0.0
    %297 = vmatpush2.msra.mxu0 0.0
    %298 = vmatprep.subr.mxu0 0.0
    %299 = vmatpush2.msra.mxu0 0.0
    %300 = vmatprep.subr.mxu0 0.0
    %301 = vmatpush2.msra.mxu0 0.0
    %302 = vmatprep.mubr.f32.mxu0 0.0
    %303 = vmatmul.mubr.f32.gmra.mxu0 %v236
    %v304 = vpop.f32.mrf.mxu0
    %v305 = vadd.f32 %v110, %v304
    %v306 = vpop.f32.mrf.mxu0
    %v307 = vadd.f32 %v114, %v306
    %308 = vdwg.mxu0
    %v309 = vadd.f32 %v233, %v305
    %v310 = vxor.u32 %v309, 2147483648
    %v311 = vmul.f32 %v310, 1.442695
    %v312 = vpow.pop %v311
    %v313 = vadd.f32 %v312, 1.0
    %v314 = vrcp.pop %v313
    %v315 = vmul.f32 1.0, %v314
    %v316 = vmul.f32 %v315, %v307
    %v317 = vadd.f32 %v234, %v316
    %v318 = vtanh.pop %v317
    %v319 = vsub.f32 1.0, %v315
    %321 = vrot.lane.b32.xlu0 %v318, 64
    %v322 = vpop.permute.xlu0 %321
    %v324 = vmul.f32 %v319, %v322
    %325 = vrot.lane.b32.xlu0 %v219, 64
    %v326 = vpop.permute.xlu0 %325
    %v328 = vmul.f32 %v315, %v326
    %v329 = vadd.f32 %v324, %v328
    %v330 = vsel %vm58, 1, 6
    %vm331 = vcmp.lt.s32.totalorder %v330, %v55
    %333 = vrot.lane.b32.xlu0 %v329, 64
    %v334 = vpop.permute.xlu0 %333
    %v336 = vsel %vm331, %v334, %v219
    %v337 = vsel %vm331, %v334, 0.0
    %s338 = scalar_lea.vmem [#allocation7], 4
    %339 = vst.msk [vmem:[%s338] sm:$0xf] %vm221, %v337
    %s340 = scalar_lea.vmem [#allocation2], 16
    %v341 = vld [vmem:[%s340] sm:$0xff]
    %s342 = scalar_lea.vmem [#allocation2], 40
    %v343 = vld [vmem:[%s342] sm:$0xff]
    %v345 = vcombine.high %v341, %v341
    %v348 = vcombine.high %v343, %v343
    %v350 = vsel %vm75, %v341, %v343
    %v351 = vsel %vm76, %v345, %v348
    %v353 = vsel %vm117, %v336, 0
    %355 = vmatprep.subr.mxu0 0.0
    %356 = vmatpush1.msra.mxu0 0.0
    %357 = vmatprep.subr.mxu0 0.0
    %358 = vmatpush1.msra.mxu0 0.0
    %359 = vmatprep.subr.mxu0 0.0
    %360 = vmatpush1.msra.mxu0 0.0
    %361 = vmatprep.subr.mxu0 0.0
    %362 = vmatpush1.msra.mxu0 0.0
    %363 = vmatprep.subr.mxu0 0.0
    %364 = vmatpush1.msra.mxu0 0.0
    %365 = vmatprep.subr.mxu0 0.0
    %366 = vmatpush1.msra.mxu0 0.0
    %367 = vmatprep.subr.mxu0 0.0
    %368 = vmatpush1.msra.mxu0 0.0
    %369 = vmatprep.subr.mxu0 0.0
    %370 = vmatpush1.msra.mxu0 0.0
    %371 = vmatprep.subr.mxu0 %v92
    %372 = vmatpush1.msra.mxu0 %v91
    %373 = vmatprep.subr.mxu0 %v90
    %374 = vmatpush1.msra.mxu0 %v89
    %375 = vmatprep.subr.mxu0 %v88
    %376 = vmatpush1.msra.mxu0 %v87
    %377 = vmatprep.subr.mxu0 %v86
    %378 = vmatpush1.msra.mxu0 %v85
    %379 = vmatprep.subr.mxu0 %v84
    %380 = vmatpush1.msra.mxu0 %v83
    %381 = vmatprep.subr.mxu0 %v82
    %382 = vmatpush1.msra.mxu0 %v81
    %383 = vmatprep.subr.mxu0 %v80
    %384 = vmatpush1.msra.mxu0 %v79
    %385 = vmatprep.subr.mxu0 %v78
    %386 = vmatpush1.msra.mxu0 %v77
    %387 = vmatprep.subr.mxu0 0.0
    %388 = vmatpush2.msra.mxu0 0.0
    %389 = vmatprep.subr.mxu0 0.0
    %390 = vmatpush2.msra.mxu0 0.0
    %391 = vmatprep.subr.mxu0 0.0
    %392 = vmatpush2.msra.mxu0 0.0
    %393 = vmatprep.subr.mxu0 0.0
    %394 = vmatpush2.msra.mxu0 0.0
    %395 = vmatprep.subr.mxu0 0.0
    %396 = vmatpush2.msra.mxu0 0.0
    %397 = vmatprep.subr.mxu0 0.0
    %398 = vmatpush2.msra.mxu0 0.0
    %399 = vmatprep.subr.mxu0 0.0
    %400 = vmatpush2.msra.mxu0 0.0
    %401 = vmatprep.subr.mxu0 0.0
    %402 = vmatpush2.msra.mxu0 0.0
    %403 = vmatprep.subr.mxu0 0.0
    %404 = vmatpush2.msra.mxu0 0.0
    %405 = vmatprep.subr.mxu0 0.0
    %406 = vmatpush2.msra.mxu0 0.0
    %407 = vmatprep.subr.mxu0 0.0
    %408 = vmatpush2.msra.mxu0 0.0
    %409 = vmatprep.subr.mxu0 0.0
    %410 = vmatpush2.msra.mxu0 0.0
    %411 = vmatprep.subr.mxu0 0.0
    %412 = vmatpush2.msra.mxu0 0.0
    %413 = vmatprep.subr.mxu0 0.0
    %414 = vmatpush2.msra.mxu0 0.0
    %415 = vmatprep.subr.mxu0 0.0
    %416 = vmatpush2.msra.mxu0 0.0
    %417 = vmatprep.subr.mxu0 0.0
    %418 = vmatpush2.msra.mxu0 0.0
    %419 = vmatprep.mubr.f32.mxu0 0.0
    %420 = vmatmul.mubr.f32.gmra.mxu0 %v353
    %v421 = vpop.f32.mrf.mxu0
    %v422 = vadd.f32 %v110, %v421
    %v423 = vpop.f32.mrf.mxu0
    %v424 = vadd.f32 %v114, %v423
    %425 = vdwg.mxu0
    %v426 = vadd.f32 %v350, %v422
    %v427 = vxor.u32 %v426, 2147483648
    %v428 = vmul.f32 %v427, 1.442695
    %v429 = vpow.pop %v428
    %v430 = vadd.f32 %v429, 1.0
    %v431 = vrcp.pop %v430
    %v432 = vmul.f32 1.0, %v431
    %v433 = vmul.f32 %v432, %v424
    %v434 = vadd.f32 %v351, %v433
    %v435 = vtanh.pop %v434
    %v436 = vsub.f32 1.0, %v432
    %438 = vrot.lane.b32.xlu0 %v435, 64
    %v439 = vpop.permute.xlu0 %438
    %v441 = vmul.f32 %v436, %v439
    %442 = vrot.lane.b32.xlu0 %v336, 64
    %v443 = vpop.permute.xlu0 %442
    %v445 = vmul.f32 %v432, %v443
    %v446 = vadd.f32 %v441, %v445
    %v447 = vsel %vm58, 2, 5
    %vm448 = vcmp.lt.s32.totalorder %v447, %v55
    %450 = vrot.lane.b32.xlu0 %v446, 64
    %v451 = vpop.permute.xlu0 %450
    %v453 = vsel %vm448, %v451, %v336
    %v454 = vsel %vm448, %v451, 0.0
    %s455 = scalar_lea.vmem [#allocation7], 8
    %456 = vst.msk [vmem:[%s455] sm:$0xf] %vm221, %v454
    %s457 = scalar_lea.vmem [#allocation2], 24
    %v458 = vld [vmem:[%s457] sm:$0xff]
    %s459 = scalar_lea.vmem [#allocation2], 32
    %v460 = vld [vmem:[%s459] sm:$0xff]
    %v462 = vcombine.high %v458, %v458
    %v465 = vcombine.high %v460, %v460
    %v467 = vsel %vm75, %v458, %v460
    %v468 = vsel %vm76, %v462, %v465
    %v470 = vsel %vm117, %v453, 0
    %472 = vmatprep.subr.mxu0 0.0
    %473 = vmatpush1.msra.mxu0 0.0
    %474 = vmatprep.subr.mxu0 0.0
    %475 = vmatpush1.msra.mxu0 0.0
    %476 = vmatprep.subr.mxu0 0.0
    %477 = vmatpush1.msra.mxu0 0.0
    %478 = vmatprep.subr.mxu0 0.0
    %479 = vmatpush1.msra.mxu0 0.0
    %480 = vmatprep.subr.mxu0 0.0
    %481 = vmatpush1.msra.mxu0 0.0
    %482 = vmatprep.subr.mxu0 0.0
    %483 = vmatpush1.msra.mxu0 0.0
    %484 = vmatprep.subr.mxu0 0.0
    %485 = vmatpush1.msra.mxu0 0.0
    %486 = vmatprep.subr.mxu0 0.0
    %487 = vmatpush1.msra.mxu0 0.0
    %488 = vmatprep.subr.mxu0 %v92
    %489 = vmatpush1.msra.mxu0 %v91
    %490 = vmatprep.subr.mxu0 %v90
    %491 = vmatpush1.msra.mxu0 %v89
    %492 = vmatprep.subr.mxu0 %v88
    %493 = vmatpush1.msra.mxu0 %v87
    %494 = vmatprep.subr.mxu0 %v86
    %495 = vmatpush1.msra.mxu0 %v85
    %496 = vmatprep.subr.mxu0 %v84
    %497 = vmatpush1.msra.mxu0 %v83
    %498 = vmatprep.subr.mxu0 %v82
    %499 = vmatpush1.msra.mxu0 %v81
    %500 = vmatprep.subr.mxu0 %v80
    %501 = vmatpush1.msra.mxu0 %v79
    %502 = vmatprep.subr.mxu0 %v78
    %503 = vmatpush1.msra.mxu0 %v77
    %504 = vmatprep.subr.mxu0 0.0
    %505 = vmatpush2.msra.mxu0 0.0
    %506 = vmatprep.subr.mxu0 0.0
    %507 = vmatpush2.msra.mxu0 0.0
    %508 = vmatprep.subr.mxu0 0.0
    %509 = vmatpush2.msra.mxu0 0.0
    %510 = vmatprep.subr.mxu0 0.0
    %511 = vmatpush2.msra.mxu0 0.0
    %512 = vmatprep.subr.mxu0 0.0
    %513 = vmatpush2.msra.mxu0 0.0
    %514 = vmatprep.subr.mxu0 0.0
    %515 = vmatpush2.msra.mxu0 0.0
    %516 = vmatprep.subr.mxu0 0.0
    %517 = vmatpush2.msra.mxu0 0.0
    %518 = vmatprep.subr.mxu0 0.0
    %519 = vmatpush2.msra.mxu0 0.0
    %520 = vmatprep.subr.mxu0 0.0
    %521 = vmatpush2.msra.mxu0 0.0
    %522 = vmatprep.subr.mxu0 0.0
    %523 = vmatpush2.msra.mxu0 0.0
    %524 = vmatprep.subr.mxu0 0.0
    %525 = vmatpush2.msra.mxu0 0.0
    %526 = vmatprep.subr.mxu0 0.0
    %527 = vmatpush2.msra.mxu0 0.0
    %528 = vmatprep.subr.mxu0 0.0
    %529 = vmatpush2.msra.mxu0 0.0
    %530 = vmatprep.subr.mxu0 0.0
    %531 = vmatpush2.msra.mxu0 0.0
    %532 = vmatprep.subr.mxu0 0.0
    %533 = vmatpush2.msra.mxu0 0.0
    %534 = vmatprep.subr.mxu0 0.0
    %535 = vmatpush2.msra.mxu0 0.0
    %536 = vmatprep.mubr.f32.mxu0 0.0
    %537 = vmatmul.mubr.f32.gmra.mxu0 %v470
    %v538 = vpop.f32.mrf.mxu0
    %v539 = vadd.f32 %v110, %v538
    %v540 = vpop.f32.mrf.mxu0
    %v541 = vadd.f32 %v114, %v540
    %542 = vdwg.mxu0
    %v543 = vadd.f32 %v467, %v539
    %v544 = vxor.u32 %v543, 2147483648
    %v545 = vmul.f32 %v544, 1.442695
    %v546 = vpow.pop %v545
    %v547 = vadd.f32 %v546, 1.0
    %v548 = vrcp.pop %v547
    %v549 = vmul.f32 1.0, %v548
    %v550 = vmul.f32 %v549, %v541
    %v551 = vadd.f32 %v468, %v550
    %v552 = vtanh.pop %v551
    %v553 = vsub.f32 1.0, %v549
    %555 = vrot.lane.b32.xlu0 %v552, 64
    %v556 = vpop.permute.xlu0 %555
    %v558 = vmul.f32 %v553, %v556
    %559 = vrot.lane.b32.xlu0 %v453, 64
    %v560 = vpop.permute.xlu0 %559
    %v562 = vmul.f32 %v549, %v560
    %v563 = vadd.f32 %v558, %v562
    %v564 = vsel %vm58, 3, 4
    %vm565 = vcmp.lt.s32.totalorder %v564, %v55
    %567 = vrot.lane.b32.xlu0 %v563, 64
    %v568 = vpop.permute.xlu0 %567
    %v570 = vsel %vm565, %v568, %v453
    %v571 = vsel %vm565, %v568, 0.0
    %s572 = scalar_lea.vmem [#allocation7], 12
    %573 = vst.msk [vmem:[%s572] sm:$0xf] %vm221, %v571
    %v574 = vld [vmem:[%s459] sm:$0xff]
    %v575 = vld [vmem:[%s457] sm:$0xff]
    %v577 = vcombine.high %v574, %v574
    %v580 = vcombine.high %v575, %v575
    %v582 = vsel %vm75, %v574, %v575
    %v583 = vsel %vm76, %v577, %v580
    %v585 = vsel %vm117, %v570, 0
    %587 = vmatprep.subr.mxu0 0.0
    %588 = vmatpush1.msra.mxu0 0.0
    %589 = vmatprep.subr.mxu0 0.0
    %590 = vmatpush1.msra.mxu0 0.0
    %591 = vmatprep.subr.mxu0 0.0
    %592 = vmatpush1.msra.mxu0 0.0
    %593 = vmatprep.subr.mxu0 0.0
    %594 = vmatpush1.msra.mxu0 0.0
    %595 = vmatprep.subr.mxu0 0.0
    %596 = vmatpush1.msra.mxu0 0.0
    %597 = vmatprep.subr.mxu0 0.0
    %598 = vmatpush1.msra.mxu0 0.0
    %599 = vmatprep.subr.mxu0 0.0
    %600 = vmatpush1.msra.mxu0 0.0
    %601 = vmatprep.subr.mxu0 0.0
    %602 = vmatpush1.msra.mxu0 0.0
    %603 = vmatprep.subr.mxu0 %v92
    %604 = vmatpush1.msra.mxu0 %v91
    %605 = vmatprep.subr.mxu0 %v90
    %606 = vmatpush1.msra.mxu0 %v89
    %607 = vmatprep.subr.mxu0 %v88
    %608 = vmatpush1.msra.mxu0 %v87
    %609 = vmatprep.subr.mxu0 %v86
    %610 = vmatpush1.msra.mxu0 %v85
    %611 = vmatprep.subr.mxu0 %v84
    %612 = vmatpush1.msra.mxu0 %v83
    %613 = vmatprep.subr.mxu0 %v82
    %614 = vmatpush1.msra.mxu0 %v81
    %615 = vmatprep.subr.mxu0 %v80
    %616 = vmatpush1.msra.mxu0 %v79
    %617 = vmatprep.subr.mxu0 %v78
    %618 = vmatpush1.msra.mxu0 %v77
    %619 = vmatprep.subr.mxu0 0.0
    %620 = vmatpush2.msra.mxu0 0.0
    %621 = vmatprep.subr.mxu0 0.0
    %622 = vmatpush2.msra.mxu0 0.0
    %623 = vmatprep.subr.mxu0 0.0
    %624 = vmatpush2.msra.mxu0 0.0
    %625 = vmatprep.subr.mxu0 0.0
    %626 = vmatpush2.msra.mxu0 0.0
    %627 = vmatprep.subr.mxu0 0.0
    %628 = vmatpush2.msra.mxu0 0.0
    %629 = vmatprep.subr.mxu0 0.0
    %630 = vmatpush2.msra.mxu0 0.0
    %631 = vmatprep.subr.mxu0 0.0
    %632 = vmatpush2.msra.mxu0 0.0
    %633 = vmatprep.subr.mxu0 0.0
    %634 = vmatpush2.msra.mxu0 0.0
    %635 = vmatprep.subr.mxu0 0.0
    %636 = vmatpush2.msra.mxu0 0.0
    %637 = vmatprep.subr.mxu0 0.0
    %638 = vmatpush2.msra.mxu0 0.0
    %639 = vmatprep.subr.mxu0 0.0
    %640 = vmatpush2.msra.mxu0 0.0
    %641 = vmatprep.subr.mxu0 0.0
    %642 = vmatpush2.msra.mxu0 0.0
    %643 = vmatprep.subr.mxu0 0.0
    %644 = vmatpush2.msra.mxu0 0.0
    %645 = vmatprep.subr.mxu0 0.0
    %646 = vmatpush2.msra.mxu0 0.0
    %647 = vmatprep.subr.mxu0 0.0
    %648 = vmatpush2.msra.mxu0 0.0
    %649 = vmatprep.subr.mxu0 0.0
    %650 = vmatpush2.msra.mxu0 0.0
    %651 = vmatprep.mubr.f32.mxu0 0.0
    %652 = vmatmul.mubr.f32.gmra.mxu0 %v585
    %v653 = vpop.f32.mrf.mxu0
    %v654 = vadd.f32 %v110, %v653
    %v655 = vpop.f32.mrf.mxu0
    %v656 = vadd.f32 %v114, %v655
    %657 = vdwg.mxu0
    %v658 = vadd.f32 %v582, %v654
    %v659 = vxor.u32 %v658, 2147483648
    %v660 = vmul.f32 %v659, 1.442695
    %v661 = vpow.pop %v660
    %v662 = vadd.f32 %v661, 1.0
    %v663 = vrcp.pop %v662
    %v664 = vmul.f32 1.0, %v663
    %v665 = vmul.f32 %v664, %v656
    %v666 = vadd.f32 %v583, %v665
    %v667 = vtanh.pop %v666
    %v668 = vsub.f32 1.0, %v664
    %670 = vrot.lane.b32.xlu0 %v667, 64
    %v671 = vpop.permute.xlu0 %670
    %v673 = vmul.f32 %v668, %v671
    %674 = vrot.lane.b32.xlu0 %v570, 64
    %v675 = vpop.permute.xlu0 %674
    %v677 = vmul.f32 %v664, %v675
    %v678 = vadd.f32 %v673, %v677
    %v679 = vsel %vm58, 4, 3
    %vm680 = vcmp.lt.s32.totalorder %v679, %v55
    %682 = vrot.lane.b32.xlu0 %v678, 64
    %v683 = vpop.permute.xlu0 %682
    %v685 = vsel %vm680, %v683, %v570
    %v686 = vsel %vm680, %v683, 0.0
    %s687 = scalar_lea.vmem [#allocation7], 16
    %688 = vst.msk [vmem:[%s687] sm:$0xf] %vm221, %v686
    %v689 = vld [vmem:[%s342] sm:$0xff]
    %v690 = vld [vmem:[%s340] sm:$0xff]
    %v692 = vcombine.high %v689, %v689
    %v695 = vcombine.high %v690, %v690
    %v697 = vsel %vm75, %v689, %v690
    %v698 = vsel %vm76, %v692, %v695
    %v700 = vsel %vm117, %v685, 0
    %702 = vmatprep.subr.mxu0 0.0
    %703 = vmatpush1.msra.mxu0 0.0
    %704 = vmatprep.subr.mxu0 0.0
    %705 = vmatpush1.msra.mxu0 0.0
    %706 = vmatprep.subr.mxu0 0.0
    %707 = vmatpush1.msra.mxu0 0.0
    %708 = vmatprep.subr.mxu0 0.0
    %709 = vmatpush1.msra.mxu0 0.0
    %710 = vmatprep.subr.mxu0 0.0
    %711 = vmatpush1.msra.mxu0 0.0
    %712 = vmatprep.subr.mxu0 0.0
    %713 = vmatpush1.msra.mxu0 0.0
    %714 = vmatprep.subr.mxu0 0.0
    %715 = vmatpush1.msra.mxu0 0.0
    %716 = vmatprep.subr.mxu0 0.0
    %717 = vmatpush1.msra.mxu0 0.0
    %718 = vmatprep.subr.mxu0 %v92
    %719 = vmatpush1.msra.mxu0 %v91
    %720 = vmatprep.subr.mxu0 %v90
    %721 = vmatpush1.msra.mxu0 %v89
    %722 = vmatprep.subr.mxu0 %v88
    %723 = vmatpush1.msra.mxu0 %v87
    %724 = vmatprep.subr.mxu0 %v86
    %725 = vmatpush1.msra.mxu0 %v85
    %726 = vmatprep.subr.mxu0 %v84
    %727 = vmatpush1.msra.mxu0 %v83
    %728 = vmatprep.subr.mxu0 %v82
    %729 = vmatpush1.msra.mxu0 %v81
    %730 = vmatprep.subr.mxu0 %v80
    %731 = vmatpush1.msra.mxu0 %v79
    %732 = vmatprep.subr.mxu0 %v78
    %733 = vmatpush1.msra.mxu0 %v77
    %734 = vmatprep.subr.mxu0 0.0
    %735 = vmatpush2.msra.mxu0 0.0
    %736 = vmatprep.subr.mxu0 0.0
    %737 = vmatpush2.msra.mxu0 0.0
    %738 = vmatprep.subr.mxu0 0.0
    %739 = vmatpush2.msra.mxu0 0.0
    %740 = vmatprep.subr.mxu0 0.0
    %741 = vmatpush2.msra.mxu0 0.0
    %742 = vmatprep.subr.mxu0 0.0
    %743 = vmatpush2.msra.mxu0 0.0
    %744 = vmatprep.subr.mxu0 0.0
    %745 = vmatpush2.msra.mxu0 0.0
    %746 = vmatprep.subr.mxu0 0.0
    %747 = vmatpush2.msra.mxu0 0.0
    %748 = vmatprep.subr.mxu0 0.0
    %749 = vmatpush2.msra.mxu0 0.0
    %750 = vmatprep.subr.mxu0 0.0
    %751 = vmatpush2.msra.mxu0 0.0
    %752 = vmatprep.subr.mxu0 0.0
    %753 = vmatpush2.msra.mxu0 0.0
    %754 = vmatprep.subr.mxu0 0.0
    %755 = vmatpush2.msra.mxu0 0.0
    %756 = vmatprep.subr.mxu0 0.0
    %757 = vmatpush2.msra.mxu0 0.0
    %758 = vmatprep.subr.mxu0 0.0
    %759 = vmatpush2.msra.mxu0 0.0
    %760 = vmatprep.subr.mxu0 0.0
    %761 = vmatpush2.msra.mxu0 0.0
    %762 = vmatprep.subr.mxu0 0.0
    %763 = vmatpush2.msra.mxu0 0.0
    %764 = vmatprep.subr.mxu0 0.0
    %765 = vmatpush2.msra.mxu0 0.0
    %766 = vmatprep.mubr.f32.mxu0 0.0
    %767 = vmatmul.mubr.f32.gmra.mxu0 %v700
    %v768 = vpop.f32.mrf.mxu0
    %v769 = vadd.f32 %v110, %v768
    %v770 = vpop.f32.mrf.mxu0
    %v771 = vadd.f32 %v114, %v770
    %772 = vdwg.mxu0
    %v773 = vadd.f32 %v697, %v769
    %v774 = vxor.u32 %v773, 2147483648
    %v775 = vmul.f32 %v774, 1.442695
    %v776 = vpow.pop %v775
    %v777 = vadd.f32 %v776, 1.0
    %v778 = vrcp.pop %v777
    %v779 = vmul.f32 1.0, %v778
    %v780 = vmul.f32 %v779, %v771
    %v781 = vadd.f32 %v698, %v780
    %v782 = vtanh.pop %v781
    %v783 = vsub.f32 1.0, %v779
    %785 = vrot.lane.b32.xlu0 %v782, 64
    %v786 = vpop.permute.xlu0 %785
    %v788 = vmul.f32 %v783, %v786
    %789 = vrot.lane.b32.xlu0 %v685, 64
    %v790 = vpop.permute.xlu0 %789
    %v792 = vmul.f32 %v779, %v790
    %v793 = vadd.f32 %v788, %v792
    %v794 = vsel %vm58, 5, 2
    %vm795 = vcmp.lt.s32.totalorder %v794, %v55
    %797 = vrot.lane.b32.xlu0 %v793, 64
    %v798 = vpop.permute.xlu0 %797
    %v800 = vsel %vm795, %v798, %v685
    %v801 = vsel %vm795, %v798, 0.0
    %s802 = scalar_lea.vmem [#allocation7], 20
    %803 = vst.msk [vmem:[%s802] sm:$0xf] %vm221, %v801
    %v804 = vld [vmem:[%s225] sm:$0xff]
    %v805 = vld [vmem:[%s223] sm:$0xff]
    %v807 = vcombine.high %v804, %v804
    %v810 = vcombine.high %v805, %v805
    %v812 = vsel %vm75, %v804, %v805
    %v813 = vsel %vm76, %v807, %v810
    %v815 = vsel %vm117, %v800, 0
    %817 = vmatprep.subr.mxu0 0.0
    %818 = vmatpush1.msra.mxu0 0.0
    %819 = vmatprep.subr.mxu0 0.0
    %820 = vmatpush1.msra.mxu0 0.0
    %821 = vmatprep.subr.mxu0 0.0
    %822 = vmatpush1.msra.mxu0 0.0
    %823 = vmatprep.subr.mxu0 0.0
    %824 = vmatpush1.msra.mxu0 0.0
    %825 = vmatprep.subr.mxu0 0.0
    %826 = vmatpush1.msra.mxu0 0.0
    %827 = vmatprep.subr.mxu0 0.0
    %828 = vmatpush1.msra.mxu0 0.0
    %829 = vmatprep.subr.mxu0 0.0
    %830 = vmatpush1.msra.mxu0 0.0
    %831 = vmatprep.subr.mxu0 0.0
    %832 = vmatpush1.msra.mxu0 0.0
    %833 = vmatprep.subr.mxu0 %v92
    %834 = vmatpush1.msra.mxu0 %v91
    %835 = vmatprep.subr.mxu0 %v90
    %836 = vmatpush1.msra.mxu0 %v89
    %837 = vmatprep.subr.mxu0 %v88
    %838 = vmatpush1.msra.mxu0 %v87
    %839 = vmatprep.subr.mxu0 %v86
    %840 = vmatpush1.msra.mxu0 %v85
    %841 = vmatprep.subr.mxu0 %v84
    %842 = vmatpush1.msra.mxu0 %v83
    %843 = vmatprep.subr.mxu0 %v82
    %844 = vmatpush1.msra.mxu0 %v81
    %845 = vmatprep.subr.mxu0 %v80
    %846 = vmatpush1.msra.mxu0 %v79
    %847 = vmatprep.subr.mxu0 %v78
    %848 = vmatpush1.msra.mxu0 %v77
    %849 = vmatprep.subr.mxu0 0.0
    %850 = vmatpush2.msra.mxu0 0.0
    %851 = vmatprep.subr.mxu0 0.0
    %852 = vmatpush2.msra.mxu0 0.0
    %853 = vmatprep.subr.mxu0 0.0
    %854 = vmatpush2.msra.mxu0 0.0
    %855 = vmatprep.subr.mxu0 0.0
    %856 = vmatpush2.msra.mxu0 0.0
    %857 = vmatprep.subr.mxu0 0.0
    %858 = vmatpush2.msra.mxu0 0.0
    %859 = vmatprep.subr.mxu0 0.0
    %860 = vmatpush2.msra.mxu0 0.0
    %861 = vmatprep.subr.mxu0 0.0
    %862 = vmatpush2.msra.mxu0 0.0
    %863 = vmatprep.subr.mxu0 0.0
    %864 = vmatpush2.msra.mxu0 0.0
    %865 = vmatprep.subr.mxu0 0.0
    %866 = vmatpush2.msra.mxu0 0.0
    %867 = vmatprep.subr.mxu0 0.0
    %868 = vmatpush2.msra.mxu0 0.0
    %869 = vmatprep.subr.mxu0 0.0
    %870 = vmatpush2.msra.mxu0 0.0
    %871 = vmatprep.subr.mxu0 0.0
    %872 = vmatpush2.msra.mxu0 0.0
    %873 = vmatprep.subr.mxu0 0.0
    %874 = vmatpush2.msra.mxu0 0.0
    %875 = vmatprep.subr.mxu0 0.0
    %876 = vmatpush2.msra.mxu0 0.0
    %877 = vmatprep.subr.mxu0 0.0
    %878 = vmatpush2.msra.mxu0 0.0
    %879 = vmatprep.subr.mxu0 0.0
    %880 = vmatpush2.msra.mxu0 0.0
    %881 = vmatprep.mubr.f32.mxu0 0.0
    %882 = vmatmul.mubr.f32.gmra.mxu0 %v815
    %v883 = vpop.f32.mrf.mxu0
    %v884 = vadd.f32 %v110, %v883
    %v885 = vpop.f32.mrf.mxu0
    %v886 = vadd.f32 %v114, %v885
    %887 = vdwg.mxu0
    %v888 = vadd.f32 %v812, %v884
    %v889 = vxor.u32 %v888, 2147483648
    %v890 = vmul.f32 %v889, 1.442695
    %v891 = vpow.pop %v890
    %v892 = vadd.f32 %v891, 1.0
    %v893 = vrcp.pop %v892
    %v894 = vmul.f32 1.0, %v893
    %v895 = vmul.f32 %v894, %v886
    %v896 = vadd.f32 %v813, %v895
    %v897 = vtanh.pop %v896
    %v898 = vsub.f32 1.0, %v894
    %900 = vrot.lane.b32.xlu0 %v897, 64
    %v901 = vpop.permute.xlu0 %900
    %v903 = vmul.f32 %v898, %v901
    %904 = vrot.lane.b32.xlu0 %v800, 64
    %v905 = vpop.permute.xlu0 %904
    %v907 = vmul.f32 %v894, %v905
    %v908 = vadd.f32 %v903, %v907
    %v909 = vsel %vm58, 6, 1
    %vm910 = vcmp.lt.s32.totalorder %v909, %v55
    %912 = vrot.lane.b32.xlu0 %v908, 64
    %v913 = vpop.permute.xlu0 %912
    %v915 = vsel %vm910, %v913, %v800
    %v916 = vsel %vm910, %v913, 0.0
    %s917 = scalar_lea.vmem [#allocation7], 24
    %918 = vst.msk [vmem:[%s917] sm:$0xf] %vm221, %v916
    %v919 = vld [vmem:[%s96] sm:$0xff]
    %v920 = vld [vmem:[#allocation2] sm:$0xff]
    %v922 = vcombine.high %v919, %v919
    %v925 = vcombine.high %v920, %v920
    %v927 = vsel %vm75, %v919, %v920
    %v928 = vsel %vm76, %v922, %v925
    %v930 = vsel %vm117, %v915, 0
    %932 = vmatprep.subr.mxu0 0.0
    %933 = vmatpush1.msra.mxu0 0.0
    %934 = vmatprep.subr.mxu0 0.0
    %935 = vmatpush1.msra.mxu0 0.0
    %936 = vmatprep.subr.mxu0 0.0
    %937 = vmatpush1.msra.mxu0 0.0
    %938 = vmatprep.subr.mxu0 0.0
    %939 = vmatpush1.msra.mxu0 0.0
    %940 = vmatprep.subr.mxu0 0.0
    %941 = vmatpush1.msra.mxu0 0.0
    %942 = vmatprep.subr.mxu0 0.0
    %943 = vmatpush1.msra.mxu0 0.0
    %944 = vmatprep.subr.mxu0 0.0
    %945 = vmatpush1.msra.mxu0 0.0
    %946 = vmatprep.subr.mxu0 0.0
    %947 = vmatpush1.msra.mxu0 0.0
    %948 = vmatprep.subr.mxu0 %v92
    %949 = vmatpush1.msra.mxu0 %v91
    %950 = vmatprep.subr.mxu0 %v90
    %951 = vmatpush1.msra.mxu0 %v89
    %952 = vmatprep.subr.mxu0 %v88
    %953 = vmatpush1.msra.mxu0 %v87
    %954 = vmatprep.subr.mxu0 %v86
    %955 = vmatpush1.msra.mxu0 %v85
    %956 = vmatprep.subr.mxu0 %v84
    %957 = vmatpush1.msra.mxu0 %v83
    %958 = vmatprep.subr.mxu0 %v82
    %959 = vmatpush1.msra.mxu0 %v81
    %960 = vmatprep.subr.mxu0 %v80
    %961 = vmatpush1.msra.mxu0 %v79
    %962 = vmatprep.subr.mxu0 %v78
    %963 = vmatpush1.msra.mxu0 %v77
    %964 = vmatprep.subr.mxu0 0.0
    %965 = vmatpush2.msra.mxu0 0.0
    %966 = vmatprep.subr.mxu0 0.0
    %967 = vmatpush2.msra.mxu0 0.0
    %968 = vmatprep.subr.mxu0 0.0
    %969 = vmatpush2.msra.mxu0 0.0
    %970 = vmatprep.subr.mxu0 0.0
    %971 = vmatpush2.msra.mxu0 0.0
    %972 = vmatprep.subr.mxu0 0.0
    %973 = vmatpush2.msra.mxu0 0.0
    %974 = vmatprep.subr.mxu0 0.0
    %975 = vmatpush2.msra.mxu0 0.0
    %976 = vmatprep.subr.mxu0 0.0
    %977 = vmatpush2.msra.mxu0 0.0
    %978 = vmatprep.subr.mxu0 0.0
    %979 = vmatpush2.msra.mxu0 0.0
    %980 = vmatprep.subr.mxu0 0.0
    %981 = vmatpush2.msra.mxu0 0.0
    %982 = vmatprep.subr.mxu0 0.0
    %983 = vmatpush2.msra.mxu0 0.0
    %984 = vmatprep.subr.mxu0 0.0
    %985 = vmatpush2.msra.mxu0 0.0
    %986 = vmatprep.subr.mxu0 0.0
    %987 = vmatpush2.msra.mxu0 0.0
    %988 = vmatprep.subr.mxu0 0.0
    %989 = vmatpush2.msra.mxu0 0.0
    %990 = vmatprep.subr.mxu0 0.0
    %991 = vmatpush2.msra.mxu0 0.0
    %992 = vmatprep.subr.mxu0 0.0
    %993 = vmatpush2.msra.mxu0 0.0
    %994 = vmatprep.subr.mxu0 0.0
    %995 = vmatpush2.msra.mxu0 0.0
    %996 = vmatprep.mubr.f32.mxu0 0.0
    %997 = vmatmul.mubr.f32.gmra.mxu0 %v930
    %v998 = vpop.f32.mrf.mxu0
    %v999 = vadd.f32 %v110, %v998
    %v1000 = vpop.f32.mrf.mxu0
    %v1001 = vadd.f32 %v114, %v1000
    %1002 = vdwg.mxu0
    %v1003 = vadd.f32 %v927, %v999
    %v1004 = vxor.u32 %v1003, 2147483648
    %v1005 = vmul.f32 %v1004, 1.442695
    %v1006 = vpow.pop %v1005
    %v1007 = vadd.f32 %v1006, 1.0
    %v1008 = vrcp.pop %v1007
    %v1009 = vmul.f32 1.0, %v1008
    %v1010 = vmul.f32 %v1009, %v1001
    %v1011 = vadd.f32 %v928, %v1010
    %v1012 = vtanh.pop %v1011
    %v1013 = vsub.f32 1.0, %v1009
    %1015 = vrot.lane.b32.xlu0 %v1012, 64
    %v1016 = vpop.permute.xlu0 %1015
    %v1018 = vmul.f32 %v1013, %v1016
    %1019 = vrot.lane.b32.xlu0 %v915, 64
    %v1020 = vpop.permute.xlu0 %1019
    %v1022 = vmul.f32 %v1009, %v1020
    %v1023 = vadd.f32 %v1018, %v1022
    %v1024 = vsel %vm58, 7, 0
    %vm1025 = vcmp.lt.s32.totalorder %v1024, %v55
    %1027 = vrot.lane.b32.xlu0 %v1023, 64
    %v1028 = vpop.permute.xlu0 %1027
    %v1030 = vsel %vm1025, %v1028, %v915
    %v1031 = vsel %vm1025, %v1028, 0.0
    %s1032 = scalar_lea.vmem [#allocation7], 28
    %1033 = vst.msk [vmem:[%s1032] sm:$0xf] %vm221, %v1031
    %1034 = vst.msk [vmem:[#allocation8] sm:$0xf] %vm221, %v1030
    // Predicated region
    $region30: #{tpu_custom_call.1} parent=1 // pred_check
      _
    $region31: #{tpu_custom_call.1} parent=1 // pred_check_branch
      %1036 = sbr.rel (0) target = $region33
    $region32: #{tpu_custom_call.1} parent=1 // pred_region
      %s1038 = ssub.s32 512, 512
      %1039 = vsyncadd [#allocation4], %s1038
      %s1040 = sshll.u32 [#allocation7], 4
      %s1041 = int_to_ptr.vmem [resolvable:$true] %s1040
      %1046 = dma.vmem_to_hbm [thread:$0]  %s1041, 512, %s5, [#allocation4], 64, 64, 4
    $region33: #{tpu_custom_call.1} parent=1 // pred_fallthru
      _
    // Predicated region
    $region34: #{tpu_custom_call.1} parent=1 // pred_check
      _
    $region35: #{tpu_custom_call.1} parent=1 // pred_check_branch
      %1048 = sbr.rel (0) target = $region37
    $region36: #{tpu_custom_call.1} parent=1 // pred_region
      %s1050 = ssub.s32 64, 64
      %1051 = vsyncadd [#allocation9], %s1050
      %s1053 = sshll.u32 [#allocation8], 4
      %s1054 = int_to_ptr.vmem [resolvable:$true] %s1053
      %1056 = dma.vmem_to_hbm [thread:$0]  %s1054, 64, %s6, [#allocation9]
    $region37: #{tpu_custom_call.1} parent=1 // pred_fallthru
      _
    // Predicated region
    $region38: #{tpu_custom_call.1} parent=1 // pred_check
      _
    $region39: #{tpu_custom_call.1} parent=1 // pred_check_branch
      %1058 = sbr.rel (0) target = $region41
    $region40: #{tpu_custom_call.1} parent=1 // pred_region
      %1059 = dma.done [#allocation4], 512
    $region41: #{tpu_custom_call.1} parent=1 // pred_fallthru
      _
    // Predicated region
    $region42: #{tpu_custom_call.1} parent=1 // pred_check
      _
    $region43: #{tpu_custom_call.1} parent=1 // pred_check_branch
      %1061 = sbr.rel (0) target = $region45
    $region44: #{tpu_custom_call.1} parent=1 // pred_region
      %1062 = dma.done [#allocation9], 64
    $region45: #{tpu_custom_call.1} parent=1 // pred_fallthru
      _
    %1063 = vsyncpa [#allocation3], 1
    %1064 = vsyncpa [#allocation6], 1
    %1065 = vsyncpa [#allocation4], 1
    %1066 = vsyncpa [#allocation9], 1

</llo_original>
